<compile_context>
chip_gen: v5e
topology: v5e:2x2
jax: 0.10.0
libtpu: 0.0.40
codegen_flags: <defaults>
</compile_context>

<pallas_src>
import functools

import jax
import jax.numpy as jnp
from jax.experimental import pallas as pl
from jax.experimental.pallas import tpu as pltpu

TILE_M = 256  # conv matmul row tile; multiple of 16 (bf16 sublane packing)


# ----------------------------------------------------------------------------
# Pallas kernels
# ----------------------------------------------------------------------------
def _matmul_bias_act_kernel(x_ref, w_ref, b_ref, o_ref, *, apply_tanh):
    # bf16 operands -> f32 accumulate on the MXU; f32 epilogue.
    acc = jnp.dot(x_ref[...], w_ref[...], preferred_element_type=jnp.float32)
    acc = acc + b_ref[...]
    if apply_tanh:
        acc = jnp.tanh(acc)                       # EUP slot, effectively free
    o_ref[...] = acc.astype(o_ref.dtype)


def matmul_bias_act(x, w, b, *, apply_tanh, out_dtype=jnp.bfloat16,
                    tile_m=TILE_M):
    """act(x @ w + b);  x:(M,K), w:(K,N), b:(N,).  M is tiled ('parallel')."""
    M, K = x.shape
    K2, N = w.shape
    assert K == K2
    xb = x.astype(jnp.bfloat16)
    wb = w.astype(jnp.bfloat16)
    b2 = b.reshape(1, N).astype(jnp.float32)

    if M > tile_m:
        tm = tile_m
        Mp = pl.cdiv(M, tm) * tm
        if Mp != M:                                # pad rows; sliced off below
            xb = jnp.pad(xb, ((0, Mp - M), (0, 0)))
    else:
        tm, Mp = M, M                              # single full block
    grid_m = Mp // tm

    cost = pl.CostEstimate(
        flops=2 * Mp * K * N,
        transcendentals=(Mp * N) if apply_tanh else 0,
        bytes_accessed=Mp * K * 2 + K * N * 2 + N * 4
        + Mp * N * jnp.dtype(out_dtype).itemsize,
    )
    kernel = functools.partial(_matmul_bias_act_kernel, apply_tanh=apply_tanh)
    out = pl.pallas_call(
        kernel,
        out_shape=jax.ShapeDtypeStruct((Mp, N), out_dtype),
        grid=(grid_m,),
        in_specs=[
            pl.BlockSpec((tm, K), lambda i: (i, 0)),
            pl.BlockSpec((K, N), lambda i: (0, 0)),
            pl.BlockSpec((1, N), lambda i: (0, 0)),
        ],
        out_specs=pl.BlockSpec((tm, N), lambda i: (i, 0)),
        compiler_params=pltpu.CompilerParams(
            dimension_semantics=("parallel",)),
        cost_estimate=cost,
    )(xb, wb, b2)
    return out[:M] if Mp != M else out


def _conv_bn_tanh_kernel(x_ref, w_ref, b_ref, g_ref, beta_ref, o_ref, *, eps):
    # conv matmul + bias, then training-mode BatchNorm (per-batch stats,
    # biased variance) + tanh as a fused f32 epilogue.
    acc = jnp.dot(x_ref[...], w_ref[...], preferred_element_type=jnp.float32)
    acc = acc + b_ref[...]
    mean = jnp.mean(acc, axis=0, keepdims=True)               # f32 stats
    ctr = acc - mean
    var = jnp.mean(ctr * ctr, axis=0, keepdims=True)          # biased var
    inv_std = jax.lax.rsqrt(var + eps)
    o_ref[...] = jnp.tanh(ctr * inv_std * g_ref[...] + beta_ref[...]
                          ).astype(o_ref.dtype)


def matmul_bias_bn_tanh(x, w, b, gamma, beta, *, eps=1e-5,
                        out_dtype=jnp.bfloat16):
    """tanh(BatchNorm(x @ w + b)).  BN needs whole-batch statistics, so the
    entire (N*OH*OW, C) output is kept in one VMEM block (grid=(1,))."""
    M, K = x.shape
    K2, N = w.shape
    assert K == K2
    xb = x.astype(jnp.bfloat16)
    wb = w.astype(jnp.bfloat16)
    b2 = b.reshape(1, N).astype(jnp.float32)
    g2 = gamma.reshape(1, N).astype(jnp.float32)
    be2 = beta.reshape(1, N).astype(jnp.float32)

    cost = pl.CostEstimate(
        flops=2 * M * K * N + 8 * M * N,
        transcendentals=M * N + N,                 # tanh + rsqrt
        bytes_accessed=M * K * 2 + K * N * 2 + 3 * N * 4
        + M * N * jnp.dtype(out_dtype).itemsize,
    )
    kernel = functools.partial(_conv_bn_tanh_kernel, eps=eps)
    return pl.pallas_call(
        kernel,
        out_shape=jax.ShapeDtypeStruct((M, N), out_dtype),
        grid=(1,),
        in_specs=[
            pl.BlockSpec((M, K), lambda i: (0, 0)),
            pl.BlockSpec((K, N), lambda i: (0, 0)),
            pl.BlockSpec((1, N), lambda i: (0, 0)),
            pl.BlockSpec((1, N), lambda i: (0, 0)),
            pl.BlockSpec((1, N), lambda i: (0, 0)),
        ],
        out_specs=pl.BlockSpec((M, N), lambda i: (0, 0)),
        compiler_params=pltpu.CompilerParams(
            dimension_semantics=("arbitrary",)),
        cost_estimate=cost,
    )(xb, wb, b2, g2, be2)


def _linear_tail_kernel(y_ref, w1_ref, b1_ref, w2_ref, b2_ref,
                        w3_ref, b3_ref, o_ref):
    # lin1 -> lin2 -> classifier fused; intermediates stay on-chip.
    h = jnp.dot(y_ref[...], w1_ref[...],
                preferred_element_type=jnp.float32) + b1_ref[...]
    h = jnp.dot(h.astype(jnp.bfloat16), w2_ref[...],
                preferred_element_type=jnp.float32) + b2_ref[...]
    h = jnp.dot(h.astype(jnp.bfloat16), w3_ref[...],
                preferred_element_type=jnp.float32) + b3_ref[...]
    o_ref[...] = h.astype(o_ref.dtype)


def linear_tail(y, w1, b1, w2, b2, w3, b3):
    M, K1 = y.shape
    N1, N2, N3 = w1.shape[1], w2.shape[1], w3.shape[1]
    yb = y.astype(jnp.bfloat16)
    w1b = w1.astype(jnp.bfloat16)
    w2b = w2.astype(jnp.bfloat16)
    w3b = w3.astype(jnp.bfloat16)
    b1f = b1.reshape(1, N1).astype(jnp.float32)
    b2f = b2.reshape(1, N2).astype(jnp.float32)
    b3f = b3.reshape(1, N3).astype(jnp.float32)

    cost = pl.CostEstimate(
        flops=2 * M * (K1 * N1 + N1 * N2 + N2 * N3),
        transcendentals=0,
        bytes_accessed=(M * K1 + K1 * N1 + N1 * N2 + N2 * N3) * 2
        + (N1 + N2 + N3) * 4 + M * N3 * 4,
    )

    def full(shape):
        return pl.BlockSpec(shape, lambda i: (0, 0))

    return pl.pallas_call(
        _linear_tail_kernel,
        out_shape=jax.ShapeDtypeStruct((M, N3), jnp.float32),
        grid=(1,),
        in_specs=[
            full((M, K1)),
            full((K1, N1)), full((1, N1)),
            full((N1, N2)), full((1, N2)),
            full((N2, N3)), full((1, N3)),
        ],
        out_specs=full((M, N3)),
        compiler_params=pltpu.CompilerParams(
            dimension_semantics=("arbitrary",)),
        cost_estimate=cost,
    )(yb, w1b, b1f, w2b, b2f, w3b, b3f)


# ----------------------------------------------------------------------------
# Glue: im2col (strided slicing) and conv wrappers
# ----------------------------------------------------------------------------
def im2col_nhwc(x, kh, kw, stride):
    """x: (N, H, W, C) -> patches (N*OH*OW, kh*kw*C) in (i, j, c) order."""
    # TODO(synk): fuse patch construction into the conv kernel (DMA NHWC row
    # strips into VMEM + static slices) to drop the extra patch-matrix HBM
    # traffic at large batch; at these shapes XLA fuses the slices acceptably.
    N, H, W, C = x.shape
    oh = (H - kh) // stride + 1
    ow = (W - kw) // stride + 1
    cols = []
    for i in range(kh):
        for j in range(kw):
            cols.append(
                x[:, i: i + stride * (oh - 1) + 1: stride,
                     j: j + stride * (ow - 1) + 1: stride, :])
    p = jnp.stack(cols, axis=3)                    # (N, OH, OW, kh*kw, C)
    return p.reshape(N * oh * ow, kh * kw * C), oh, ow


def conv2d(x_nhwc, w_col, b, *, kh, kw, stride, apply_tanh):
    N = x_nhwc.shape[0]
    patches, oh, ow = im2col_nhwc(x_nhwc, kh, kw, stride)
    y = matmul_bias_act(patches, w_col, b, apply_tanh=apply_tanh)
    return y.reshape(N, oh, ow, w_col.shape[1])


def conv2d_bn_tanh(x_nhwc, w_col, b, gamma, beta, *, kh, kw, stride, eps=1e-5):
    N = x_nhwc.shape[0]
    patches, oh, ow = im2col_nhwc(x_nhwc, kh, kw, stride)
    y = matmul_bias_bn_tanh(patches, w_col, b, gamma, beta, eps=eps)
    return y.reshape(N, oh, ow, w_col.shape[1])


# ----------------------------------------------------------------------------
# Parameter construction (deterministic, PyTorch-default-style uniform init)
# ----------------------------------------------------------------------------
def _uniform(key, shape, bound):
    return jax.random.uniform(key, shape, jnp.float32, -bound, bound)


def init_params(key, *, channels=3, ch1=16, ch2=32, ch3=64, kh=4, kw=4,
                jj=2, kk=2, encoded_space_dim=16, outputs_a=8):
    keys = jax.random.split(key, 12)
    params = {}

    def conv_init(k_w, k_b, cin, cout):
        bound = 1.0 / jnp.sqrt(cin * kh * kw)
        # PyTorch (Cout, Cin, kh, kw) -> im2col layout (kh*kw*Cin, Cout).
        w = _uniform(k_w, (cout, cin, kh, kw), bound)
        w_col = jnp.transpose(w, (2, 3, 1, 0)).reshape(kh * kw * cin, cout)
        return w_col, _uniform(k_b, (cout,), bound)

    def lin_init(k_w, k_b, fin, fout):
        bound = 1.0 / jnp.sqrt(fin)
        w = _uniform(k_w, (fout, fin), bound)      # PyTorch (out, in)
        return jnp.transpose(w), _uniform(k_b, (fout,), bound)  # store (in,out)

    params["enc1_w"], params["enc1_b"] = conv_init(keys[0], keys[1], channels, ch1)
    params["enc2_w"], params["enc2_b"] = conv_init(keys[2], keys[3], ch1, ch2)
    params["enc3_w"], params["enc3_b"] = conv_init(keys[4], keys[5], ch2, ch3)
    params["bn_gamma"] = jnp.ones((ch2,), jnp.float32)
    params["bn_beta"] = jnp.zeros((ch2,), jnp.float32)

    # lin1 consumes the NHWC flatten directly: permute its (torch-(C,H,W)-
    # ordered) input rows once at init instead of transposing activations at
    # every forward.  NHWC row i = h*kk*ch3 + w*ch3 + c  <-  torch row
    # perm[i] = c*jj*kk + h*kk + w.
    lin1_w, params["lin1_b"] = lin_init(keys[6], keys[7], ch3 * jj * kk, 128)
    idx = jnp.arange(ch3 * jj * kk)
    c = idx % ch3
    w_ = (idx // ch3) % kk
    h = idx // (ch3 * kk)
    perm = c * (jj * kk) + h * kk + w_
    params["lin1_w"] = lin1_w[perm]

    params["lin2_w"], params["lin2_b"] = lin_init(keys[8], keys[9], 128,
                                                  encoded_space_dim)
    params["cls_w"], params["cls_b"] = lin_init(keys[10], keys[11],
                                                encoded_space_dim, outputs_a)
    return params


# ----------------------------------------------------------------------------
# Forward pass (matches CNN.forward)
# ----------------------------------------------------------------------------
def cnn_forward(x_nchw, params):
    kh = kw = 4
    stride = 2
    # NCHW -> NHWC once; activations travel as bf16 (MXU operands), epilogues
    # stay in f32 inside the kernels.
    x = jnp.transpose(x_nchw, (0, 2, 3, 1)).astype(jnp.bfloat16)

    # enc1 + tanh                                      (N, 15, 15, 16)
    h = conv2d(x, params["enc1_w"], params["enc1_b"],
               kh=kh, kw=kw, stride=stride, apply_tanh=True)
    # enc2 + BatchNorm2d(train-mode batch stats) + tanh (N, 6, 6, 32), fused
    h = conv2d_bn_tanh(h, params["enc2_w"], params["enc2_b"],
                       params["bn_gamma"], params["bn_beta"],
                       kh=kh, kw=kw, stride=stride)
    # enc3 + tanh                                      (N, 2, 2, 64)
    h = conv2d(h, params["enc3_w"], params["enc3_b"],
               kh=kh, kw=kw, stride=stride, apply_tanh=True)

    # NHWC flatten (no activation transpose: lin1_w rows permuted at init).
    N = h.shape[0]
    y = h.reshape(N, -1)

    # encoder_lin (Linear -> Linear) + classifier, fused in one Pallas kernel.
    return linear_tail(y,
                       params["lin1_w"], params["lin1_b"],
                       params["lin2_w"], params["lin2_b"],
                       params["cls_w"], params["cls_b"])


# ----------------------------------------------------------------------------
if __name__ == "__main__":
    key = jax.random.PRNGKey(0)
    k_param, k_x = jax.random.split(key)

    # Input (2, 3, 32, 32): conv spatial 32 -> 15 -> 6 -> 2  => jj = kk = 2.
    N, C, H, W = 2, 3, 32, 32
    jj = kk = 2
    encoded_space_dim = 16
    OUTPUTS_a = 8

    params = init_params(k_param, jj=jj, kk=kk,
                         encoded_space_dim=encoded_space_dim,
                         outputs_a=OUTPUTS_a)
    x = jax.random.normal(k_x, (N, C, H, W), jnp.float32)

    fwd = jax.jit(cnn_forward)
    out = jax.block_until_ready(fwd(x, params))
    assert out.shape == (N, OUTPUTS_a), out.shape
    assert out.dtype == jnp.float32
    print("KERNEL_OK")
</pallas_src>

<mosaic_0001>
module attributes {stable_mosaic.version = 11 : i64} {
  func.func @_matmul_bias_act_kernel(%arg0: i32, %arg1: memref<256x48xbf16, #tpu.memory_space<vmem>>, %arg2: memref<48x16xbf16, #tpu.memory_space<vmem>>, %arg3: memref<1x16xf32, #tpu.memory_space<vmem>>, %arg4: memref<256x16xbf16, #tpu.memory_space<vmem>>) attributes {dimension_semantics = [#tpu.dimension_semantics<parallel>], iteration_bounds = array<i64: 2>, scalar_prefetch = 0 : i64, scratch_operands = 0 : i64, tpu.core_type = #tpu.core_type<tc>, window_params = [{transform_indices = @transform_0, window_bounds = array<i64: 256, 48>}, {pipeline_mode = #tpu.pipeline_mode<synchronous>, transform_indices = @transform_1, window_bounds = array<i64: 48, 16>}, {pipeline_mode = #tpu.pipeline_mode<synchronous>, transform_indices = @transform_2, window_bounds = array<i64: 1, 16>}, {transform_indices = @transform_3, window_bounds = array<i64: 256, 16>}]} {
    %c0 = arith.constant 0 : index
    %c0_0 = arith.constant 0 : index
    %0 = vector.load %arg1[%c0, %c0_0] : memref<256x48xbf16, #tpu.memory_space<vmem>>, vector<256x48xbf16>
    %c0_1 = arith.constant 0 : index
    %c0_2 = arith.constant 0 : index
    %1 = vector.load %arg2[%c0_1, %c0_2] : memref<48x16xbf16, #tpu.memory_space<vmem>>, vector<48x16xbf16>
    %cst = arith.constant dense<0.000000e+00> : vector<256x16xf32>
    %2 = tpu.matmul %0, %1, %cst {dimension_numbers = #tpu.dot_dimension_numbers<[1], [0], [0], [1], [0, 0, 1, 1], [], []>} : vector<256x48xbf16>, vector<48x16xbf16>, vector<256x16xf32> -> vector<256x16xf32>
    %c0_3 = arith.constant 0 : index
    %c0_4 = arith.constant 0 : index
    %3 = vector.load %arg3[%c0_3, %c0_4] : memref<1x16xf32, #tpu.memory_space<vmem>>, vector<1x16xf32>
    %4 = vector.broadcast %3 : vector<1x16xf32> to vector<256x16xf32>
    %5 = arith.addf %2, %4 : vector<256x16xf32>
    %6 = math.tanh %5 : vector<256x16xf32>
    %7 = arith.truncf %6 : vector<256x16xf32> to vector<256x16xbf16>
    %c0_5 = arith.constant 0 : index
    %c0_6 = arith.constant 0 : index
    %8 = vector.load %arg4[%c0_5, %c0_6] : memref<256x16xbf16, #tpu.memory_space<vmem>>, vector<256x16xbf16>
    tpu.vector_store %arg4[%c0_5, %c0_6], %7 {strides = array<i32>} : memref<256x16xbf16, #tpu.memory_space<vmem>>, vector<256x16xbf16>,
    return
  }
  func.func @transform_0(%arg0: i32) -> (i32, i32) {
    %c0_i32 = arith.constant 0 : i32
    %c0_i32_0 = arith.constant 0 : i32
    return %arg0, %c0_i32 : i32, i32
  }
  func.func @transform_1(%arg0: i32) -> (i32, i32) {
    %c0_i32 = arith.constant 0 : i32
    %c0_i32_0 = arith.constant 0 : i32
    %c0_i32_1 = arith.constant 0 : i32
    return %c0_i32, %c0_i32_0 : i32, i32
  }
  func.func @transform_2(%arg0: i32) -> (i32, i32) {
    %c0_i32 = arith.constant 0 : i32
    %c0_i32_0 = arith.constant 0 : i32
    %c0_i32_1 = arith.constant 0 : i32
    return %c0_i32, %c0_i32_0 : i32, i32
  }
  func.func @transform_3(%arg0: i32) -> (i32, i32) {
    %c0_i32 = arith.constant 0 : i32
    %c0_i32_0 = arith.constant 0 : i32
    return %arg0, %c0_i32 : i32, i32
  }
}

module attributes {stable_mosaic.version = 11 : i64} {
  func.func @_conv_bn_tanh_kernel(%arg0: i32, %arg1: memref<72x256xbf16, #tpu.memory_space<vmem>>, %arg2: memref<256x32xbf16, #tpu.memory_space<vmem>>, %arg3: memref<1x32xf32, #tpu.memory_space<vmem>>, %arg4: memref<1x32xf32, #tpu.memory_space<vmem>>, %arg5: memref<1x32xf32, #tpu.memory_space<vmem>>, %arg6: memref<72x32xbf16, #tpu.memory_space<vmem>>) attributes {dimension_semantics = [#tpu.dimension_semantics<arbitrary>], iteration_bounds = array<i64: 1>, scalar_prefetch = 0 : i64, scratch_operands = 0 : i64, tpu.core_type = #tpu.core_type<tc>, window_params = [{pipeline_mode = #tpu.pipeline_mode<synchronous>, transform_indices = @transform_0, window_bounds = array<i64: 72, 256>}, {pipeline_mode = #tpu.pipeline_mode<synchronous>, transform_indices = @transform_1, window_bounds = array<i64: 256, 32>}, {pipeline_mode = #tpu.pipeline_mode<synchronous>, transform_indices = @transform_2, window_bounds = array<i64: 1, 32>}, {pipeline_mode = #tpu.pipeline_mode<synchronous>, transform_indices = @transform_3, window_bounds = array<i64: 1, 32>}, {pipeline_mode = #tpu.pipeline_mode<synchronous>, transform_indices = @transform_4, window_bounds = array<i64: 1, 32>}, {pipeline_mode = #tpu.pipeline_mode<synchronous>, transform_indices = @transform_5, window_bounds = array<i64: 72, 32>}]} {
    %c0 = arith.constant 0 : index
    %c0_0 = arith.constant 0 : index
    %0 = vector.load %arg1[%c0, %c0_0] : memref<72x256xbf16, #tpu.memory_space<vmem>>, vector<72x256xbf16>
    %c0_1 = arith.constant 0 : index
    %c0_2 = arith.constant 0 : index
    %1 = vector.load %arg2[%c0_1, %c0_2] : memref<256x32xbf16, #tpu.memory_space<vmem>>, vector<256x32xbf16>
    %cst = arith.constant dense<0.000000e+00> : vector<72x32xf32>
    %2 = tpu.matmul %0, %1, %cst {dimension_numbers = #tpu.dot_dimension_numbers<[1], [0], [0], [1], [0, 0, 1, 1], [], []>} : vector<72x256xbf16>, vector<256x32xbf16>, vector<72x32xf32> -> vector<72x32xf32>
    %c0_3 = arith.constant 0 : index
    %c0_4 = arith.constant 0 : index
    %3 = vector.load %arg3[%c0_3, %c0_4] : memref<1x32xf32, #tpu.memory_space<vmem>>, vector<1x32xf32>
    %4 = vector.broadcast %3 : vector<1x32xf32> to vector<72x32xf32>
    %5 = arith.addf %2, %4 : vector<72x32xf32>
    %cst_5 = arith.constant dense<0.000000e+00> : vector<32xf32>
    %6 = vector.multi_reduction <add>, %5, %cst_5 [0] : vector<72x32xf32> to vector<32xf32>
    %7 = vector.shape_cast %6 : vector<32xf32> to vector<1x32xf32>
    %cst_6 = arith.constant 7.200000e+01 : f32
    %8 = vector.broadcast %cst_6 : f32 to vector<1x32xf32>
    %9 = arith.divf %7, %8 : vector<1x32xf32>
    %10 = vector.broadcast %9 : vector<1x32xf32> to vector<72x32xf32>
    %11 = arith.subf %5, %10 : vector<72x32xf32>
    %12 = arith.mulf %11, %11 : vector<72x32xf32>
    %cst_7 = arith.constant dense<0.000000e+00> : vector<32xf32>
    %13 = vector.multi_reduction <add>, %12, %cst_7 [0] : vector<72x32xf32> to vector<32xf32>
    %14 = vector.shape_cast %13 : vector<32xf32> to vector<1x32xf32>
    %cst_8 = arith.constant 7.200000e+01 : f32
    %15 = vector.broadcast %cst_8 : f32 to vector<1x32xf32>
    %16 = arith.divf %14, %15 : vector<1x32xf32>
    %cst_9 = arith.constant 9.99999974E-6 : f32
    %17 = vector.broadcast %cst_9 : f32 to vector<1x32xf32>
    %18 = arith.addf %16, %17 : vector<1x32xf32>
    %19 = math.rsqrt %18 : vector<1x32xf32>
    %20 = vector.broadcast %19 : vector<1x32xf32> to vector<72x32xf32>
    %21 = arith.mulf %11, %20 : vector<72x32xf32>
    %c0_10 = arith.constant 0 : index
    %c0_11 = arith.constant 0 : index
    %22 = vector.load %arg4[%c0_10, %c0_11] : memref<1x32xf32, #tpu.memory_space<vmem>>, vector<1x32xf32>
    %23 = vector.broadcast %22 : vector<1x32xf32> to vector<72x32xf32>
    %24 = arith.mulf %21, %23 : vector<72x32xf32>
    %c0_12 = arith.constant 0 : index
    %c0_13 = arith.constant 0 : index
    %25 = vector.load %arg5[%c0_12, %c0_13] : memref<1x32xf32, #tpu.memory_space<vmem>>, vector<1x32xf32>
    %26 = vector.broadcast %25 : vector<1x32xf32> to vector<72x32xf32>
    %27 = arith.addf %24, %26 : vector<72x32xf32>
    %28 = math.tanh %27 : vector<72x32xf32>
    %29 = arith.truncf %28 : vector<72x32xf32> to vector<72x32xbf16>
    %c0_14 = arith.constant 0 : index
    %c0_15 = arith.constant 0 : index
    %30 = vector.load %arg6[%c0_14, %c0_15] : memref<72x32xbf16, #tpu.memory_space<vmem>>, vector<72x32xbf16>
    tpu.vector_store %arg6[%c0_14, %c0_15], %29 {strides = array<i32>} : memref<72x32xbf16, #tpu.memory_space<vmem>>, vector<72x32xbf16>,
    return
  }
  func.func @transform_0(%arg0: i32) -> (i32, i32) {
    %c0_i32 = arith.constant 0 : i32
    %c0_i32_0 = arith.constant 0 : i32
    %c0_i32_1 = arith.constant 0 : i32
    return %c0_i32, %c0_i32_0 : i32, i32
  }
  func.func @transform_1(%arg0: i32) -> (i32, i32) {
    %c0_i32 = arith.constant 0 : i32
    %c0_i32_0 = arith.constant 0 : i32
    %c0_i32_1 = arith.constant 0 : i32
    return %c0_i32, %c0_i32_0 : i32, i32
  }
  func.func @transform_2(%arg0: i32) -> (i32, i32) {
    %c0_i32 = arith.constant 0 : i32
    %c0_i32_0 = arith.constant 0 : i32
    %c0_i32_1 = arith.constant 0 : i32
    return %c0_i32, %c0_i32_0 : i32, i32
  }
  func.func @transform_3(%arg0: i32) -> (i32, i32) {
    %c0_i32 = arith.constant 0 : i32
    %c0_i32_0 = arith.constant 0 : i32
    %c0_i32_1 = arith.constant 0 : i32
    return %c0_i32, %c0_i32_0 : i32, i32
  }
  func.func @transform_4(%arg0: i32) -> (i32, i32) {
    %c0_i32 = arith.constant 0 : i32
    %c0_i32_0 = arith.constant 0 : i32
    %c0_i32_1 = arith.constant 0 : i32
    return %c0_i32, %c0_i32_0 : i32, i32
  }
  func.func @transform_5(%arg0: i32) -> (i32, i32) {
    %c0_i32 = arith.constant 0 : i32
    %c0_i32_0 = arith.constant 0 : i32
    %c0_i32_1 = arith.constant 0 : i32
    return %c0_i32, %c0_i32_0 : i32, i32
  }
}

module attributes {stable_mosaic.version = 11 : i64} {
  func.func @_matmul_bias_act_kernel(%arg0: i32, %arg1: memref<8x512xbf16, #tpu.memory_space<vmem>>, %arg2: memref<512x64xbf16, #tpu.memory_space<vmem>>, %arg3: memref<1x64xf32, #tpu.memory_space<vmem>>, %arg4: memref<8x64xbf16, #tpu.memory_space<vmem>>) attributes {dimension_semantics = [#tpu.dimension_semantics<parallel>], iteration_bounds = array<i64: 1>, scalar_prefetch = 0 : i64, scratch_operands = 0 : i64, tpu.core_type = #tpu.core_type<tc>, window_params = [{transform_indices = @transform_0, window_bounds = array<i64: 8, 512>}, {pipeline_mode = #tpu.pipeline_mode<synchronous>, transform_indices = @transform_1, window_bounds = array<i64: 512, 64>}, {pipeline_mode = #tpu.pipeline_mode<synchronous>, transform_indices = @transform_2, window_bounds = array<i64: 1, 64>}, {transform_indices = @transform_3, window_bounds = array<i64: 8, 64>}]} {
    %c0 = arith.constant 0 : index
    %c0_0 = arith.constant 0 : index
    %0 = vector.load %arg1[%c0, %c0_0] : memref<8x512xbf16, #tpu.memory_space<vmem>>, vector<8x512xbf16>
    %c0_1 = arith.constant 0 : index
    %c0_2 = arith.constant 0 : index
    %1 = vector.load %arg2[%c0_1, %c0_2] : memref<512x64xbf16, #tpu.memory_space<vmem>>, vector<512x64xbf16>
    %cst = arith.constant dense<0.000000e+00> : vector<8x64xf32>
    %2 = tpu.matmul %0, %1, %cst {dimension_numbers = #tpu.dot_dimension_numbers<[1], [0], [0], [1], [0, 0, 1, 1], [], []>} : vector<8x512xbf16>, vector<512x64xbf16>, vector<8x64xf32> -> vector<8x64xf32>
    %c0_3 = arith.constant 0 : index
    %c0_4 = arith.constant 0 : index
    %3 = vector.load %arg3[%c0_3, %c0_4] : memref<1x64xf32, #tpu.memory_space<vmem>>, vector<1x64xf32>
    %4 = vector.broadcast %3 : vector<1x64xf32> to vector<8x64xf32>
    %5 = arith.addf %2, %4 : vector<8x64xf32>
    %6 = math.tanh %5 : vector<8x64xf32>
    %7 = arith.truncf %6 : vector<8x64xf32> to vector<8x64xbf16>
    %c0_5 = arith.constant 0 : index
    %c0_6 = arith.constant 0 : index
    %8 = vector.load %arg4[%c0_5, %c0_6] : memref<8x64xbf16, #tpu.memory_space<vmem>>, vector<8x64xbf16>
    tpu.vector_store %arg4[%c0_5, %c0_6], %7 {strides = array<i32>} : memref<8x64xbf16, #tpu.memory_space<vmem>>, vector<8x64xbf16>,
    return
  }
  func.func @transform_0(%arg0: i32) -> (i32, i32) {
    %c0_i32 = arith.constant 0 : i32
    %c0_i32_0 = arith.constant 0 : i32
    return %arg0, %c0_i32 : i32, i32
  }
  func.func @transform_1(%arg0: i32) -> (i32, i32) {
    %c0_i32 = arith.constant 0 : i32
    %c0_i32_0 = arith.constant 0 : i32
    %c0_i32_1 = arith.constant 0 : i32
    return %c0_i32, %c0_i32_0 : i32, i32
  }
  func.func @transform_2(%arg0: i32) -> (i32, i32) {
    %c0_i32 = arith.constant 0 : i32
    %c0_i32_0 = arith.constant 0 : i32
    %c0_i32_1 = arith.constant 0 : i32
    return %c0_i32, %c0_i32_0 : i32, i32
  }
  func.func @transform_3(%arg0: i32) -> (i32, i32) {
    %c0_i32 = arith.constant 0 : i32
    %c0_i32_0 = arith.constant 0 : i32
    return %arg0, %c0_i32 : i32, i32
  }
}

module attributes {stable_mosaic.version = 11 : i64} {
  func.func @_linear_tail_kernel(%arg0: i32, %arg1: memref<2x256xbf16, #tpu.memory_space<vmem>>, %arg2: memref<256x128xbf16, #tpu.memory_space<vmem>>, %arg3: memref<1x128xf32, #tpu.memory_space<vmem>>, %arg4: memref<128x16xbf16, #tpu.memory_space<vmem>>, %arg5: memref<1x16xf32, #tpu.memory_space<vmem>>, %arg6: memref<16x8xbf16, #tpu.memory_space<vmem>>, %arg7: memref<1x8xf32, #tpu.memory_space<vmem>>, %arg8: memref<2x8xf32, #tpu.memory_space<vmem>>) attributes {dimension_semantics = [#tpu.dimension_semantics<arbitrary>], iteration_bounds = array<i64: 1>, scalar_prefetch = 0 : i64, scratch_operands = 0 : i64, tpu.core_type = #tpu.core_type<tc>, window_params = [{pipeline_mode = #tpu.pipeline_mode<synchronous>, transform_indices = @transform_0, window_bounds = array<i64: 2, 256>}, {pipeline_mode = #tpu.pipeline_mode<synchronous>, transform_indices = @transform_1, window_bounds = array<i64: 256, 128>}, {pipeline_mode = #tpu.pipeline_mode<synchronous>, transform_indices = @transform_2, window_bounds = array<i64: 1, 128>}, {pipeline_mode = #tpu.pipeline_mode<synchronous>, transform_indices = @transform_3, window_bounds = array<i64: 128, 16>}, {pipeline_mode = #tpu.pipeline_mode<synchronous>, transform_indices = @transform_4, window_bounds = array<i64: 1, 16>}, {pipeline_mode = #tpu.pipeline_mode<synchronous>, transform_indices = @transform_5, window_bounds = array<i64: 16, 8>}, {pipeline_mode = #tpu.pipeline_mode<synchronous>, transform_indices = @transform_6, window_bounds = array<i64: 1, 8>}, {pipeline_mode = #tpu.pipeline_mode<synchronous>, transform_indices = @transform_7, window_bounds = array<i64: 2, 8>}]} {
    %c0 = arith.constant 0 : index
    %c0_0 = arith.constant 0 : index
    %0 = vector.load %arg1[%c0, %c0_0] : memref<2x256xbf16, #tpu.memory_space<vmem>>, vector<2x256xbf16>
    %c0_1 = arith.constant 0 : index
    %c0_2 = arith.constant 0 : index
    %1 = vector.load %arg2[%c0_1, %c0_2] : memref<256x128xbf16, #tpu.memory_space<vmem>>, vector<256x128xbf16>
    %cst = arith.constant dense<0.000000e+00> : vector<2x128xf32>
    %2 = tpu.matmul %0, %1, %cst {dimension_numbers = #tpu.dot_dimension_numbers<[1], [0], [0], [1], [0, 0, 1, 1], [], []>} : vector<2x256xbf16>, vector<256x128xbf16>, vector<2x128xf32> -> vector<2x128xf32>
    %c0_3 = arith.constant 0 : index
    %c0_4 = arith.constant 0 : index
    %3 = vector.load %arg3[%c0_3, %c0_4] : memref<1x128xf32, #tpu.memory_space<vmem>>, vector<1x128xf32>
    %4 = vector.broadcast %3 : vector<1x128xf32> to vector<2x128xf32>
    %5 = arith.addf %2, %4 : vector<2x128xf32>
    %6 = arith.truncf %5 : vector<2x128xf32> to vector<2x128xbf16>
    %c0_5 = arith.constant 0 : index
    %c0_6 = arith.constant 0 : index
    %7 = vector.load %arg4[%c0_5, %c0_6] : memref<128x16xbf16, #tpu.memory_space<vmem>>, vector<128x16xbf16>
    %cst_7 = arith.constant dense<0.000000e+00> : vector<2x16xf32>
    %8 = tpu.matmul %6, %7, %cst_7 {dimension_numbers = #tpu.dot_dimension_numbers<[1], [0], [0], [1], [0, 0, 1, 1], [], []>} : vector<2x128xbf16>, vector<128x16xbf16>, vector<2x16xf32> -> vector<2x16xf32>
    %c0_8 = arith.constant 0 : index
    %c0_9 = arith.constant 0 : index
    %9 = vector.load %arg5[%c0_8, %c0_9] : memref<1x16xf32, #tpu.memory_space<vmem>>, vector<1x16xf32>
    %10 = vector.broadcast %9 : vector<1x16xf32> to vector<2x16xf32>
    %11 = arith.addf %8, %10 : vector<2x16xf32>
    %12 = arith.truncf %11 : vector<2x16xf32> to vector<2x16xbf16>
    %c0_10 = arith.constant 0 : index
    %c0_11 = arith.constant 0 : index
    %13 = vector.load %arg6[%c0_10, %c0_11] : memref<16x8xbf16, #tpu.memory_space<vmem>>, vector<16x8xbf16>
    %cst_12 = arith.constant dense<0.000000e+00> : vector<2x8xf32>
    %14 = tpu.matmul %12, %13, %cst_12 {dimension_numbers = #tpu.dot_dimension_numbers<[1], [0], [0], [1], [0, 0, 1, 1], [], []>} : vector<2x16xbf16>, vector<16x8xbf16>, vector<2x8xf32> -> vector<2x8xf32>
    %c0_13 = arith.constant 0 : index
    %c0_14 = arith.constant 0 : index
    %15 = vector.load %arg7[%c0_13, %c0_14] : memref<1x8xf32, #tpu.memory_space<vmem>>, vector<1x8xf32>
    %16 = vector.broadcast %15 : vector<1x8xf32> to vector<2x8xf32>
    %17 = arith.addf %14, %16 : vector<2x8xf32>
    %c0_15 = arith.constant 0 : index
    %c0_16 = arith.constant 0 : index
    %18 = vector.load %arg8[%c0_15, %c0_16] : memref<2x8xf32, #tpu.memory_space<vmem>>, vector<2x8xf32>
    tpu.vector_store %arg8[%c0_15, %c0_16], %17 {strides = array<i32>} : memref<2x8xf32, #tpu.memory_space<vmem>>, vector<2x8xf32>,
    return
  }
  func.func @transform_0(%arg0: i32) -> (i32, i32) {
    %c0_i32 = arith.constant 0 : i32
    %c0_i32_0 = arith.constant 0 : i32
    %c0_i32_1 = arith.constant 0 : i32
    return %c0_i32, %c0_i32_0 : i32, i32
  }
  func.func @transform_1(%arg0: i32) -> (i32, i32) {
    %c0_i32 = arith.constant 0 : i32
    %c0_i32_0 = arith.constant 0 : i32
    %c0_i32_1 = arith.constant 0 : i32
    return %c0_i32, %c0_i32_0 : i32, i32
  }
  func.func @transform_2(%arg0: i32) -> (i32, i32) {
    %c0_i32 = arith.constant 0 : i32
    %c0_i32_0 = arith.constant 0 : i32
    %c0_i32_1 = arith.constant 0 : i32
    return %c0_i32, %c0_i32_0 : i32, i32
  }
  func.func @transform_3(%arg0: i32) -> (i32, i32) {
    %c0_i32 = arith.constant 0 : i32
    %c0_i32_0 = arith.constant 0 : i32
    %c0_i32_1 = arith.constant 0 : i32
    return %c0_i32, %c0_i32_0 : i32, i32
  }
  func.func @transform_4(%arg0: i32) -> (i32, i32) {
    %c0_i32 = arith.constant 0 : i32
    %c0_i32_0 = arith.constant 0 : i32
    %c0_i32_1 = arith.constant 0 : i32
    return %c0_i32, %c0_i32_0 : i32, i32
  }
  func.func @transform_5(%arg0: i32) -> (i32, i32) {
    %c0_i32 = arith.constant 0 : i32
    %c0_i32_0 = arith.constant 0 : i32
    %c0_i32_1 = arith.constant 0 : i32
    return %c0_i32, %c0_i32_0 : i32, i32
  }
  func.func @transform_6(%arg0: i32) -> (i32, i32) {
    %c0_i32 = arith.constant 0 : i32
    %c0_i32_0 = arith.constant 0 : i32
    %c0_i32_1 = arith.constant 0 : i32
    return %c0_i32, %c0_i32_0 : i32, i32
  }
  func.func @transform_7(%arg0: i32) -> (i32, i32) {
    %c0_i32 = arith.constant 0 : i32
    %c0_i32_0 = arith.constant 0 : i32
    %c0_i32_1 = arith.constant 0 : i32
    return %c0_i32, %c0_i32_0 : i32, i32
  }
}

</mosaic_0001>

<llo_original>
// kernel: cnn_forward.4
$region0: #{cnn_forward.4}
  #allocation0 [shape = 'u32[]', space=smem, size = 0x4, offset = 0x4, fixed_abs, tag = 'smem constant byte address 0x4 - core index']
  #allocation1 [shape = 'u32[72,128]{1,0:T(1,128)}', space=vmem, size = 0x9000, scoped, tag = 'internal scratch']
  %s0 = inlined_call_operand.vmem [shape: bf16[512,48], index: 0, kind: input, shape index: {}]
  %s1 = inlined_call_operand.vmem [shape: bf16[48,16], index: 1, kind: input, shape index: {}]
  %s2 = inlined_call_operand.vmem [shape: f32[1,16], index: 2, kind: input, shape index: {}]
  %s3 = inlined_call_operand.vmem [shape: bf16[512,16], index: 3, kind: output, shape index: {}]
  %s4 = sld [smem:[#allocation0]]
  $region45: #{cnn_forward.4} parent=0
    _
  %s6 = ssub.s32 1, %s4
  %s7 = scalar_select 0, %s6, %s4
  loop: start=0, step=1, limit=4
  $region2: #{cnn_forward.4} parent=0 // loop_pre_header
    _
  $region3: #{cnn_forward.4} parent=0 // loop_header
    %s9 = sphi 0, %s13
    %p10 = scmp.ge.s32.totalorder %s9, 4
    %s19 = sphi 0, %s21
    %s22 = sphi 0, %s19
    %s23 = sphi 0, %s22
    %s39 = sphi 0, %s23
    %s43 = sphi 0, %s43
    %s45 = sphi 0, %s43
    %s46 = sphi 0, %s45
    %s60 = sphi 0, %s46
    %s64 = sphi 0, %s64
    %s66 = sphi 0, %s64
    %s67 = sphi 0, %s66
    %s81 = sphi 0, %s67
    %s87 = sphi 0, %s89
    %s90 = sphi 0, %s87
    %s91 = sphi 0, %s90
    %s107 = sphi 0, %s91
  $region4: #{cnn_forward.4} parent=0 // loop_header_branch
    %12 = sbr.rel (%p10) target = $region8
  $region5: #{cnn_forward.4} parent=0 // loop_body
    %s14 = ssub.s32 %s9, 1
    %s15 = ssub.s32 %s9, 2
    %s16 = sadd.s32 %s9, 1
    %s17 = ssub.s32 %s9, %s16
    %p18 = scmp.eq.s32.totalorder %s17, 0
    %s20 = sadd.s32 %s19, 1
    %s21 = scalar_select %p18, %s19, %s20
    %p24 = pneg %p18
    %p25 = scmp.eq.s32.totalorder %s9, 1
    %p26 = por %p24, %p25
    %p27 = scmp.ne.s32.totalorder %s19, %s22
    %p28 = scmp.eq.s32.totalorder %s9, 0
    %p29 = por %p27, %p28
    %p30 = scmp.ne.s32.totalorder %s19, %s22
    %p31 = scmp.eq.s32.totalorder %s14, 1
    %p32 = por %p30, %p31
    %p33 = scmp.ne.s32.totalorder %s22, %s23
    %p34 = scmp.eq.s32.totalorder %s14, 0
    %p35 = por %p33, %p34
    %p36 = scmp.ne.s32.totalorder %s22, %s23
    %p37 = scmp.eq.s32.totalorder %s15, 1
    %p38 = por %p36, %p37
    %p40 = scmp.ne.s32.totalorder %s23, %s39
    %p41 = scmp.eq.s32.totalorder %s15, 0
    %p42 = por %p40, %p41
    %s44 = sadd.s32 %s43, 1
    %p47 = scmp.eq.s32.totalorder %s9, 1
    %p48 = scmp.ne.s32.totalorder %s43, %s45
    %p49 = scmp.eq.s32.totalorder %s9, 0
    %p50 = por %p48, %p49
    %p51 = scmp.ne.s32.totalorder %s43, %s45
    %p52 = scmp.eq.s32.totalorder %s14, 1
    %p53 = por %p51, %p52
    %p54 = scmp.ne.s32.totalorder %s45, %s46
    %p55 = scmp.eq.s32.totalorder %s14, 0
    %p56 = por %p54, %p55
    %p57 = scmp.ne.s32.totalorder %s45, %s46
    %p58 = scmp.eq.s32.totalorder %s15, 1
    %p59 = por %p57, %p58
    %p61 = scmp.ne.s32.totalorder %s46, %s60
    %p62 = scmp.eq.s32.totalorder %s15, 0
    %p63 = por %p61, %p62
    %s65 = sadd.s32 %s64, 1
    %p68 = scmp.eq.s32.totalorder %s9, 1
    %p69 = scmp.ne.s32.totalorder %s64, %s66
    %p70 = scmp.eq.s32.totalorder %s9, 0
    %p71 = por %p69, %p70
    %p72 = scmp.ne.s32.totalorder %s64, %s66
    %p73 = scmp.eq.s32.totalorder %s14, 1
    %p74 = por %p72, %p73
    %p75 = scmp.ne.s32.totalorder %s66, %s67
    %p76 = scmp.eq.s32.totalorder %s14, 0
    %p77 = por %p75, %p76
    %p78 = scmp.ne.s32.totalorder %s66, %s67
    %p79 = scmp.eq.s32.totalorder %s15, 1
    %p80 = por %p78, %p79
    %p82 = scmp.ne.s32.totalorder %s67, %s81
    %p83 = scmp.eq.s32.totalorder %s15, 0
    %p84 = por %p82, %p83
    %s85 = ssub.s32 %s9, %s16
    %p86 = scmp.eq.s32.totalorder %s85, 0
    %s88 = sadd.s32 %s87, 1
    %s89 = scalar_select %p86, %s87, %s88
    %p92 = pneg %p86
    %p93 = scmp.eq.s32.totalorder %s9, 1
    %p94 = por %p92, %p93
    %p95 = scmp.ne.s32.totalorder %s87, %s90
    %p96 = scmp.eq.s32.totalorder %s9, 0
    %p97 = por %p95, %p96
    %p98 = scmp.ne.s32.totalorder %s87, %s90
    %p99 = scmp.eq.s32.totalorder %s14, 1
    %p100 = por %p98, %p99
    %p101 = scmp.ne.s32.totalorder %s90, %s91
    %p102 = scmp.eq.s32.totalorder %s14, 0
    %p103 = por %p101, %p102
    %p104 = scmp.ne.s32.totalorder %s90, %s91
    %p105 = scmp.eq.s32.totalorder %s15, 1
    %p106 = por %p104, %p105
    %p108 = scmp.ne.s32.totalorder %s91, %s107
    %p109 = scmp.eq.s32.totalorder %s15, 0
    %p110 = por %p108, %p109
    %p111 = scmp.le.s32.totalorder 1, %s9
    %p112 = scmp.lt.s32.totalorder %s9, 3
    %p113 = pnand %p111, %p112
    %p114 = pneg %p113
    // Predicated region
    $region9: #{cnn_forward.4} parent=5 // pred_check
      _
    $region10: #{cnn_forward.4} parent=5 // pred_check_branch
      %116 = sbr.rel (%p113) target = $region12
    $region11: #{cnn_forward.4} parent=5 // pred_region
      %s117 = ssub.s32 %s9, 1
      // Predicated region
      $region13: #{cnn_forward.4} parent=11 // pred_check
        %p118 = pneg %p56
      $region14: #{cnn_forward.4} parent=11 // pred_check_branch
        %120 = sbr.rel (%p118) target = $region16
      $region15: #{cnn_forward.4} parent=11 // pred_region
        _
      $region16: #{cnn_forward.4} parent=11 // pred_fallthru
        _
      // Predicated region
      $region17: #{cnn_forward.4} parent=11 // pred_check
        %p121 = pneg %p77
      $region18: #{cnn_forward.4} parent=11 // pred_check_branch
        %123 = sbr.rel (%p121) target = $region20
      $region19: #{cnn_forward.4} parent=11 // pred_region
        _
      $region20: #{cnn_forward.4} parent=11 // pred_fallthru
        _
    $region12: #{cnn_forward.4} parent=5 // pred_fallthru
      _
    %p124 = scmp.lt.s32.totalorder %s9, 2
    // Predicated region
    $region21: #{cnn_forward.4} parent=5 // pred_check
      %p125 = pneg %p124
    $region22: #{cnn_forward.4} parent=5 // pred_check_branch
      %127 = sbr.rel (%p125) target = $region24
    $region23: #{cnn_forward.4} parent=5 // pred_region
      // Predicated region
      $region25: #{cnn_forward.4} parent=23 // pred_check
        %p128 = pneg %p29
      $region26: #{cnn_forward.4} parent=23 // pred_check_branch
        %130 = sbr.rel (%p128) target = $region28
      $region27: #{cnn_forward.4} parent=23 // pred_region
        %s131 = smul.u32 32, %s9
        %p132 = scmp.lt.s32.totalorder %s131, 63
        %s133 = scalar_select %p132, %s131, 63
        %s134 = smul.addr %s133, 4
        %s135 = scalar_lea.vmem %s0, %s134
        %s136 = smul.u32 32, %s9
      $region28: #{cnn_forward.4} parent=23 // pred_fallthru
        _
    $region24: #{cnn_forward.4} parent=5 // pred_fallthru
      _
    %p137 = scmp.le.s32.totalorder 1, %s9
    %p138 = scmp.lt.s32.totalorder %s9, 3
    %p139 = pnand %p137, %p138
    %p140 = pneg %p139
    // Predicated region
    $region29: #{cnn_forward.4} parent=5 // pred_check
      _
    $region30: #{cnn_forward.4} parent=5 // pred_check_branch
      %142 = sbr.rel (%p139) target = $region32
    $region31: #{cnn_forward.4} parent=5 // pred_region
      %s143 = ssub.s32 %s9, 1
      %s144 = smul.u32 32, %s14
      %p145 = scmp.lt.s32.totalorder %s144, 63
      %s146 = scalar_select %p145, %s144, 63
      %s147 = smul.addr %s146, 4
      %s148 = scalar_lea.vmem %s0, %s147
      %p149 = pneg %p35
      %p150 = pneg %p32
      %p151 = pneg %p56
      %p152 = pneg %p53
      %p153 = pneg %p77
      %p154 = pneg %p74
      %p155 = pneg %p103
      %p156 = pneg %p100
      %s157 = smul.u32 32, %s14
      %p158 = scmp.lt.s32.totalorder %s157, 63
      %s159 = scalar_select %p158, %s157, 63
      %s160 = smul.addr %s159, 4
      %s161 = scalar_lea.vmem %s3, %s160
      %s162 = smul.u32 32, %s14
      %p163 = scmp.lt.s32.totalorder %s162, 63
      %s164 = scalar_select %p163, %s162, 63
      %s165 = smul.addr %s164, 4
      %s166 = scalar_lea.vmem %s0, %s165
      %s167 = smul.u32 32, %s14
      %s168 = smul.u32 32, %s14
      %p169 = scmp.lt.s32.totalorder %s168, 63
      %s170 = scalar_select %p169, %s168, 63
      %s171 = smul.addr %s170, 4
      %s172 = scalar_lea.vmem %s3, %s171
      %s173 = smul.u32 32, %s14
      %v175 = vld [vmem:[%s166] sm:$0xf]
      %v176 = vld [vmem:[%s166 + $0x4] sm:$0xf]
      %v177 = vld [vmem:[%s166 + $0x8] sm:$0xf]
      %v178 = vld [vmem:[%s166 + $0xc] sm:$0xf]
      %v179 = vld [vmem:[%s166 + $0x10] sm:$0xf]
      %v180 = vld [vmem:[%s166 + $0x14] sm:$0xf]
      %v181 = vld [vmem:[%s166 + $0x18] sm:$0xf]
      %v182 = vld [vmem:[%s166 + $0x1c] sm:$0xf]
      %v183 = vld [vmem:[%s166 + $0x20] sm:$0xf]
      %v184 = vld [vmem:[%s166 + $0x24] sm:$0xf]
      %v185 = vld [vmem:[%s166 + $0x28] sm:$0xf]
      %v186 = vld [vmem:[%s166 + $0x2c] sm:$0xf]
      %v187 = vld [vmem:[%s166 + $0x30] sm:$0xf]
      %v188 = vld [vmem:[%s166 + $0x34] sm:$0xf]
      %v189 = vld [vmem:[%s166 + $0x38] sm:$0xf]
      %v190 = vld [vmem:[%s166 + $0x3c] sm:$0xf]
      %v191 = vld [vmem:[%s166 + $0x40] sm:$0xf]
      %v192 = vld [vmem:[%s166 + $0x44] sm:$0xf]
      %v193 = vld [vmem:[%s166 + $0x48] sm:$0xf]
      %v194 = vld [vmem:[%s166 + $0x4c] sm:$0xf]
      %v195 = vld [vmem:[%s166 + $0x50] sm:$0xf]
      %v196 = vld [vmem:[%s166 + $0x54] sm:$0xf]
      %v197 = vld [vmem:[%s166 + $0x58] sm:$0xf]
      %v198 = vld [vmem:[%s166 + $0x5c] sm:$0xf]
      %v199 = vld [vmem:[%s166 + $0x60] sm:$0xf]
      %v200 = vld [vmem:[%s166 + $0x64] sm:$0xf]
      %v201 = vld [vmem:[%s166 + $0x68] sm:$0xf]
      %v202 = vld [vmem:[%s166 + $0x6c] sm:$0xf]
      %v203 = vld [vmem:[%s166 + $0x70] sm:$0xf]
      %v204 = vld [vmem:[%s166 + $0x74] sm:$0xf]
      %v205 = vld [vmem:[%s166 + $0x78] sm:$0xf]
      %v206 = vld [vmem:[%s166 + $0x7c] sm:$0xf]
      %v207 = vld [vmem:[%s1] sm:$0xf]
      %v208 = vld [vmem:[%s1 + $0x4] sm:$0xf]
      %v209 = vld [vmem:[%s1 + $0x8] sm:$0xf]
      %v210 = vld [vmem:[%s1 + $0xc] sm:$0xf]
      %v211 = vld [vmem:[%s1 + $0x10] sm:$0xf]
      %v212 = vld [vmem:[%s1 + $0x14] sm:$0xf]
      %v213 = vld [vmem:[%s2] sm:$0x1]
      %v215 = vperm.slane %v213, 0
      %v249 = vunpack.c.l.b16 %v175
      %v250 = vunpack.c.l.b16 %v176
      %v251 = vunpack.c.l.b16 %v177
      %v252 = vunpack.c.l.b16 %v178
      %v253 = vunpack.c.l.b16 %v179
      %v254 = vunpack.c.l.b16 %v180
      %v255 = vunpack.c.l.b16 %v181
      %v256 = vunpack.c.l.b16 %v182
      %v257 = vunpack.c.l.b16 %v183
      %v258 = vunpack.c.l.b16 %v184
      %v259 = vunpack.c.l.b16 %v185
      %v260 = vunpack.c.l.b16 %v186
      %v261 = vunpack.c.l.b16 %v187
      %v262 = vunpack.c.l.b16 %v188
      %v263 = vunpack.c.l.b16 %v189
      %v264 = vunpack.c.l.b16 %v190
      %v265 = vunpack.c.l.b16 %v191
      %v266 = vunpack.c.l.b16 %v192
      %v267 = vunpack.c.l.b16 %v193
      %v268 = vunpack.c.l.b16 %v194
      %v269 = vunpack.c.l.b16 %v195
      %v270 = vunpack.c.l.b16 %v196
      %v271 = vunpack.c.l.b16 %v197
      %v272 = vunpack.c.l.b16 %v198
      %v273 = vunpack.c.l.b16 %v199
      %v274 = vunpack.c.l.b16 %v200
      %v275 = vunpack.c.l.b16 %v201
      %v276 = vunpack.c.l.b16 %v202
      %v277 = vunpack.c.l.b16 %v203
      %v278 = vunpack.c.l.b16 %v204
      %v279 = vunpack.c.l.b16 %v205
      %v280 = vunpack.c.l.b16 %v206
      %v281 = vpack.c.b16 %v250, %v249
      %v282 = vpack.c.b16 %v252, %v251
      %v283 = vpack.c.b16 %v254, %v253
      %v284 = vpack.c.b16 %v256, %v255
      %v285 = vpack.c.b16 %v258, %v257
      %v286 = vpack.c.b16 %v260, %v259
      %v287 = vpack.c.b16 %v262, %v261
      %v288 = vpack.c.b16 %v264, %v263
      %v289 = vpack.c.b16 %v266, %v265
      %v290 = vpack.c.b16 %v268, %v267
      %v291 = vpack.c.b16 %v270, %v269
      %v292 = vpack.c.b16 %v272, %v271
      %v293 = vpack.c.b16 %v274, %v273
      %v294 = vpack.c.b16 %v276, %v275
      %v295 = vpack.c.b16 %v278, %v277
      %v296 = vpack.c.b16 %v280, %v279
      %v303 = vunpack.c.l.b16 %v207
      %v304 = vunpack.c.l.b16 %v208
      %v305 = vunpack.c.l.b16 %v209
      %v306 = vunpack.c.l.b16 %v210
      %v307 = vunpack.c.l.b16 %v211
      %v308 = vunpack.c.l.b16 %v212
      %v309 = vpack.c.b16 %v304, %v303
      %v310 = vpack.c.b16 %v306, %v305
      %v311 = vpack.c.b16 %v308, %v307
      %vm315 = vcmask 392192
      %v317 = vsel %vm315, %v281, 0
      %v320 = vsel %vm315, %v282, 0
      %v323 = vsel %vm315, %v283, 0
      %v326 = vsel %vm315, %v284, 0
      %v329 = vsel %vm315, %v285, 0
      %v332 = vsel %vm315, %v286, 0
      %v335 = vsel %vm315, %v287, 0
      %v338 = vsel %vm315, %v288, 0
      %v341 = vsel %vm315, %v289, 0
      %v344 = vsel %vm315, %v290, 0
      %v347 = vsel %vm315, %v291, 0
      %v350 = vsel %vm315, %v292, 0
      %v353 = vsel %vm315, %v293, 0
      %v356 = vsel %vm315, %v294, 0
      %v359 = vsel %vm315, %v295, 0
      %v362 = vsel %vm315, %v296, 0
      %364 = vmatpush.bf16.msra.mxu0 0
      %365 = vmatpush.bf16.msra.mxu0 0
      %366 = vmatpush.bf16.msra.mxu0 0
      %367 = vmatpush.bf16.msra.mxu0 0
      %368 = vmatpush.bf16.msra.mxu0 0
      %369 = vmatpush.bf16.msra.mxu0 %v311
      %370 = vmatpush.bf16.msra.mxu0 %v310
      %371 = vmatpush.bf16.msra.mxu0 %v309
      %372 = vmatmul.bf16.gmra.mxu0 %v317
      %v373 = vpop.f32.mrf.mxu0
      %v374 = vadd.f32 %v215, %v373
      %v375 = vpop.f32.mrf.mxu0
      %v376 = vadd.f32 %v215, %v375
      %377 = vmatmul.bf16.gmra.mxu0 %v320
      %v378 = vpop.f32.mrf.mxu0
      %v379 = vadd.f32 %v215, %v378
      %v380 = vpop.f32.mrf.mxu0
      %v381 = vadd.f32 %v215, %v380
      %382 = vmatmul.bf16.gmra.mxu0 %v323
      %v383 = vpop.f32.mrf.mxu0
      %v384 = vadd.f32 %v215, %v383
      %v385 = vpop.f32.mrf.mxu0
      %v386 = vadd.f32 %v215, %v385
      %387 = vmatmul.bf16.gmra.mxu0 %v326
      %v388 = vpop.f32.mrf.mxu0
      %v389 = vadd.f32 %v215, %v388
      %v390 = vpop.f32.mrf.mxu0
      %v391 = vadd.f32 %v215, %v390
      %392 = vmatmul.bf16.gmra.mxu0 %v329
      %v393 = vpop.f32.mrf.mxu0
      %v394 = vadd.f32 %v215, %v393
      %v395 = vpop.f32.mrf.mxu0
      %v396 = vadd.f32 %v215, %v395
      %397 = vmatmul.bf16.gmra.mxu0 %v332
      %v398 = vpop.f32.mrf.mxu0
      %v399 = vadd.f32 %v215, %v398
      %v400 = vpop.f32.mrf.mxu0
      %v401 = vadd.f32 %v215, %v400
      %402 = vmatmul.bf16.gmra.mxu0 %v335
      %v403 = vpop.f32.mrf.mxu0
      %v404 = vadd.f32 %v215, %v403
      %v405 = vpop.f32.mrf.mxu0
      %v406 = vadd.f32 %v215, %v405
      %407 = vmatmul.bf16.gmra.mxu0 %v338
      %v408 = vpop.f32.mrf.mxu0
      %v409 = vadd.f32 %v215, %v408
      %v410 = vpop.f32.mrf.mxu0
      %v411 = vadd.f32 %v215, %v410
      %412 = vmatmul.bf16.gmra.mxu0 %v341
      %v413 = vpop.f32.mrf.mxu0
      %v414 = vadd.f32 %v215, %v413
      %v415 = vpop.f32.mrf.mxu0
      %v416 = vadd.f32 %v215, %v415
      %417 = vmatmul.bf16.gmra.mxu0 %v344
      %v418 = vpop.f32.mrf.mxu0
      %v419 = vadd.f32 %v215, %v418
      %v420 = vpop.f32.mrf.mxu0
      %v421 = vadd.f32 %v215, %v420
      %422 = vmatmul.bf16.gmra.mxu0 %v347
      %v423 = vpop.f32.mrf.mxu0
      %v424 = vadd.f32 %v215, %v423
      %v425 = vpop.f32.mrf.mxu0
      %v426 = vadd.f32 %v215, %v425
      %427 = vmatmul.bf16.gmra.mxu0 %v350
      %v428 = vpop.f32.mrf.mxu0
      %v429 = vadd.f32 %v215, %v428
      %v430 = vpop.f32.mrf.mxu0
      %v431 = vadd.f32 %v215, %v430
      %432 = vmatmul.bf16.gmra.mxu0 %v353
      %v433 = vpop.f32.mrf.mxu0
      %v434 = vadd.f32 %v215, %v433
      %v435 = vpop.f32.mrf.mxu0
      %v436 = vadd.f32 %v215, %v435
      %437 = vmatmul.bf16.gmra.mxu0 %v356
      %v438 = vpop.f32.mrf.mxu0
      %v439 = vadd.f32 %v215, %v438
      %v440 = vpop.f32.mrf.mxu0
      %v441 = vadd.f32 %v215, %v440
      %442 = vmatmul.bf16.gmra.mxu0 %v359
      %v443 = vpop.f32.mrf.mxu0
      %v444 = vadd.f32 %v215, %v443
      %v445 = vpop.f32.mrf.mxu0
      %v446 = vadd.f32 %v215, %v445
      %447 = vmatmul.bf16.gmra.mxu0 %v362
      %v448 = vpop.f32.mrf.mxu0
      %v449 = vadd.f32 %v215, %v448
      %v450 = vpop.f32.mrf.mxu0
      %v451 = vadd.f32 %v215, %v450
      %452 = vdwg.mxu0
      %v453 = vtanh.pop %v374
      %v454 = vtanh.pop %v376
      %v455 = vtanh.pop %v379
      %v456 = vtanh.pop %v381
      %v457 = vtanh.pop %v384
      %v458 = vtanh.pop %v386
      %v459 = vtanh.pop %v389
      %v460 = vtanh.pop %v391
      %v461 = vtanh.pop %v394
      %v462 = vtanh.pop %v396
      %v463 = vtanh.pop %v399
      %v464 = vtanh.pop %v401
      %v465 = vtanh.pop %v404
      %v466 = vtanh.pop %v406
      %v467 = vtanh.pop %v409
      %v468 = vtanh.pop %v411
      %v469 = vtanh.pop %v414
      %v470 = vtanh.pop %v416
      %v471 = vtanh.pop %v419
      %v472 = vtanh.pop %v421
      %v473 = vtanh.pop %v424
      %v474 = vtanh.pop %v426
      %v475 = vtanh.pop %v429
      %v476 = vtanh.pop %v431
      %v477 = vtanh.pop %v434
      %v478 = vtanh.pop %v436
      %v479 = vtanh.pop %v439
      %v480 = vtanh.pop %v441
      %v481 = vtanh.pop %v444
      %v482 = vtanh.pop %v446
      %v483 = vtanh.pop %v449
      %v484 = vtanh.pop %v451
      %v485 = vpack.c.bf16 %v453, %v453
      %v486 = vpack.c.bf16 %v454, %v454
      %v487 = vpack.c.bf16 %v455, %v455
      %v488 = vpack.c.bf16 %v456, %v456
      %v489 = vpack.c.bf16 %v457, %v457
      %v490 = vpack.c.bf16 %v458, %v458
      %v491 = vpack.c.bf16 %v459, %v459
      %v492 = vpack.c.bf16 %v460, %v460
      %v493 = vpack.c.bf16 %v461, %v461
      %v494 = vpack.c.bf16 %v462, %v462
      %v495 = vpack.c.bf16 %v463, %v463
      %v496 = vpack.c.bf16 %v464, %v464
      %v497 = vpack.c.bf16 %v465, %v465
      %v498 = vpack.c.bf16 %v466, %v466
      %v499 = vpack.c.bf16 %v467, %v467
      %v500 = vpack.c.bf16 %v468, %v468
      %v501 = vpack.c.bf16 %v469, %v469
      %v502 = vpack.c.bf16 %v470, %v470
      %v503 = vpack.c.bf16 %v471, %v471
      %v504 = vpack.c.bf16 %v472, %v472
      %v505 = vpack.c.bf16 %v473, %v473
      %v506 = vpack.c.bf16 %v474, %v474
      %v507 = vpack.c.bf16 %v475, %v475
      %v508 = vpack.c.bf16 %v476, %v476
      %v509 = vpack.c.bf16 %v477, %v477
      %v510 = vpack.c.bf16 %v478, %v478
      %v511 = vpack.c.bf16 %v479, %v479
      %v512 = vpack.c.bf16 %v480, %v480
      %v513 = vpack.c.bf16 %v481, %v481
      %v514 = vpack.c.bf16 %v482, %v482
      %v515 = vpack.c.bf16 %v483, %v483
      %v516 = vpack.c.bf16 %v484, %v484
      %vm517 = vcmask 125952
      %518 = vst.msk [vmem:[%s172] sm:$0xf] %vm517, %v485
      %519 = vst.msk [vmem:[%s172 + $0x4] sm:$0xf] %vm517, %v486
      %520 = vst.msk [vmem:[%s172 + $0x8] sm:$0xf] %vm517, %v487
      %521 = vst.msk [vmem:[%s172 + $0xc] sm:$0xf] %vm517, %v488
      %522 = vst.msk [vmem:[%s172 + $0x10] sm:$0xf] %vm517, %v489
      %523 = vst.msk [vmem:[%s172 + $0x14] sm:$0xf] %vm517, %v490
      %524 = vst.msk [vmem:[%s172 + $0x18] sm:$0xf] %vm517, %v491
      %525 = vst.msk [vmem:[%s172 + $0x1c] sm:$0xf] %vm517, %v492
      %526 = vst.msk [vmem:[%s172 + $0x20] sm:$0xf] %vm517, %v493
      %527 = vst.msk [vmem:[%s172 + $0x24] sm:$0xf] %vm517, %v494
      %528 = vst.msk [vmem:[%s172 + $0x28] sm:$0xf] %vm517, %v495
      %529 = vst.msk [vmem:[%s172 + $0x2c] sm:$0xf] %vm517, %v496
      %530 = vst.msk [vmem:[%s172 + $0x30] sm:$0xf] %vm517, %v497
      %531 = vst.msk [vmem:[%s172 + $0x34] sm:$0xf] %vm517, %v498
      %532 = vst.msk [vmem:[%s172 + $0x38] sm:$0xf] %vm517, %v499
      %533 = vst.msk [vmem:[%s172 + $0x3c] sm:$0xf] %vm517, %v500
      %534 = vst.msk [vmem:[%s172 + $0x40] sm:$0xf] %vm517, %v501
      %535 = vst.msk [vmem:[%s172 + $0x44] sm:$0xf] %vm517, %v502
      %536 = vst.msk [vmem:[%s172 + $0x48] sm:$0xf] %vm517, %v503
      %537 = vst.msk [vmem:[%s172 + $0x4c] sm:$0xf] %vm517, %v504
      %538 = vst.msk [vmem:[%s172 + $0x50] sm:$0xf] %vm517, %v505
      %539 = vst.msk [vmem:[%s172 + $0x54] sm:$0xf] %vm517, %v506
      %540 = vst.msk [vmem:[%s172 + $0x58] sm:$0xf] %vm517, %v507
      %541 = vst.msk [vmem:[%s172 + $0x5c] sm:$0xf] %vm517, %v508
      %542 = vst.msk [vmem:[%s172 + $0x60] sm:$0xf] %vm517, %v509
      %543 = vst.msk [vmem:[%s172 + $0x64] sm:$0xf] %vm517, %v510
      %544 = vst.msk [vmem:[%s172 + $0x68] sm:$0xf] %vm517, %v511
      %545 = vst.msk [vmem:[%s172 + $0x6c] sm:$0xf] %vm517, %v512
      %546 = vst.msk [vmem:[%s172 + $0x70] sm:$0xf] %vm517, %v513
      %547 = vst.msk [vmem:[%s172 + $0x74] sm:$0xf] %vm517, %v514
      %548 = vst.msk [vmem:[%s172 + $0x78] sm:$0xf] %vm517, %v515
      %549 = vst.msk [vmem:[%s172 + $0x7c] sm:$0xf] %vm517, %v516
      %s550 = smul.u32 32, %s14
      %p551 = scmp.lt.s32.totalorder %s550, 63
      %s552 = scalar_select %p551, %s550, 63
      %s553 = smul.addr %s552, 4
      %s554 = scalar_lea.vmem %s3, %s553
      // Predicated region
      $region33: #{cnn_forward.4} parent=31 // pred_check
        %p555 = pneg %p100
      $region34: #{cnn_forward.4} parent=31 // pred_check_branch
        %557 = sbr.rel (%p555) target = $region36
      $region35: #{cnn_forward.4} parent=31 // pred_region
        %s558 = smul.u32 32, %s14
      $region36: #{cnn_forward.4} parent=31 // pred_fallthru
        _
    $region32: #{cnn_forward.4} parent=5 // pred_fallthru
      _
    %p559 = scmp.le.s32.totalorder 2, %s9
    // Predicated region
    $region37: #{cnn_forward.4} parent=5 // pred_check
      %p560 = pneg %p559
    $region38: #{cnn_forward.4} parent=5 // pred_check_branch
      %562 = sbr.rel (%p560) target = $region40
    $region39: #{cnn_forward.4} parent=5 // pred_region
      %s563 = ssub.s32 %s9, 2
      // Predicated region
      $region41: #{cnn_forward.4} parent=39 // pred_check
        %p564 = pneg %p106
      $region42: #{cnn_forward.4} parent=39 // pred_check_branch
        %566 = sbr.rel (%p564) target = $region44
      $region43: #{cnn_forward.4} parent=39 // pred_region
        %s567 = smul.u32 32, %s15
        %p568 = scmp.lt.s32.totalorder %s567, 63
        %s569 = scalar_select %p568, %s567, 63
        %s570 = smul.addr %s569, 4
        %s571 = scalar_lea.vmem %s3, %s570
      $region44: #{cnn_forward.4} parent=39 // pred_fallthru
        _
    $region40: #{cnn_forward.4} parent=5 // pred_fallthru
      _
  $region6: #{cnn_forward.4} parent=0 // loop_footer
    %s13 = sadd.s32 1, %s9
  $region7: #{cnn_forward.4} parent=0 // loop_footer_branch
    %8 = sbr.rel target = $region3
  $region8: #{cnn_forward.4} parent=0 // loop_exit
    _

// kernel: cnn_forward.5
$region0: #{cnn_forward.5}
  #allocation0 [shape = 'u32[]', space=smem, size = 0x4, offset = 0x4, fixed_abs, tag = 'smem constant byte address 0x4 - core index']
  #allocation1 [shape = 'u32[72,128]{1,0:T(1,128)}', space=vmem, size = 0x9000, scoped, tag = 'internal scratch']
  %s0 = inlined_call_operand.vmem [shape: bf16[72,256], index: 0, kind: input, shape index: {}]
  %s1 = inlined_call_operand.vmem [shape: bf16[256,32], index: 1, kind: input, shape index: {}]
  %s2 = inlined_call_operand.vmem [shape: f32[1,32], index: 2, kind: input, shape index: {}]
  %s3 = inlined_call_operand.vmem [shape: f32[1,32], index: 3, kind: input, shape index: {}]
  %s4 = inlined_call_operand.vmem [shape: f32[1,32], index: 4, kind: input, shape index: {}]
  %s5 = inlined_call_operand.vmem [shape: bf16[72,32], index: 5, kind: output, shape index: {}]
  %s6 = sld [smem:[#allocation0]]
  $region30: #{cnn_forward.5} parent=0
    _
  %s8 = ssub.s32 1, %s6
  %s9 = scalar_select 0, %s8, %s6
  // Predicated region
  $region2: #{cnn_forward.5} parent=0 // pred_check
    _
  $region3: #{cnn_forward.5} parent=0 // pred_check_branch
    %11 = sbr.rel (0) target = $region5
  $region4: #{cnn_forward.5} parent=0 // pred_region
    _
  $region5: #{cnn_forward.5} parent=0 // pred_fallthru
    _
  // Predicated region
  $region6: #{cnn_forward.5} parent=0 // pred_check
    _
  $region7: #{cnn_forward.5} parent=0 // pred_check_branch
    %13 = sbr.rel (0) target = $region9
  $region8: #{cnn_forward.5} parent=0 // pred_region
    _
  $region9: #{cnn_forward.5} parent=0 // pred_fallthru
    _
  // Predicated region
  $region10: #{cnn_forward.5} parent=0 // pred_check
    _
  $region11: #{cnn_forward.5} parent=0 // pred_check_branch
    %15 = sbr.rel (0) target = $region13
  $region12: #{cnn_forward.5} parent=0 // pred_region
    _
  $region13: #{cnn_forward.5} parent=0 // pred_fallthru
    _
  // Predicated region
  $region14: #{cnn_forward.5} parent=0 // pred_check
    _
  $region15: #{cnn_forward.5} parent=0 // pred_check_branch
    %17 = sbr.rel (0) target = $region17
  $region16: #{cnn_forward.5} parent=0 // pred_region
    _
  $region17: #{cnn_forward.5} parent=0 // pred_fallthru
    _
  // Predicated region
  $region18: #{cnn_forward.5} parent=0 // pred_check
    _
  $region19: #{cnn_forward.5} parent=0 // pred_check_branch
    %19 = sbr.rel (0) target = $region21
  $region20: #{cnn_forward.5} parent=0 // pred_region
    _
  $region21: #{cnn_forward.5} parent=0 // pred_fallthru
    _
  %v20 = vld [vmem:[%s0] sm:$0xff]
  %v21 = vld [vmem:[%s0 + $0x8] sm:$0xff]
  %v22 = vld [vmem:[%s0 + $0x10] sm:$0xff]
  %v23 = vld [vmem:[%s0 + $0x18] sm:$0xff]
  %v24 = vld [vmem:[%s0 + $0x20] sm:$0xff]
  %v25 = vld [vmem:[%s0 + $0x28] sm:$0xff]
  %v26 = vld [vmem:[%s0 + $0x30] sm:$0xff]
  %v27 = vld [vmem:[%s0 + $0x38] sm:$0xff]
  %v28 = vld [vmem:[%s0 + $0x40] sm:$0xff]
  %v29 = vld [vmem:[%s1] sm:$0xf]
  %v30 = vld [vmem:[%s1 + $0x4] sm:$0xf]
  %v31 = vld [vmem:[%s1 + $0x8] sm:$0xf]
  %v32 = vld [vmem:[%s1 + $0xc] sm:$0xf]
  %v33 = vld [vmem:[%s1 + $0x10] sm:$0xf]
  %v34 = vld [vmem:[%s1 + $0x14] sm:$0xf]
  %v35 = vld [vmem:[%s1 + $0x18] sm:$0xf]
  %v36 = vld [vmem:[%s1 + $0x1c] sm:$0xf]
  %v37 = vld [vmem:[%s1 + $0x20] sm:$0xf]
  %v38 = vld [vmem:[%s1 + $0x24] sm:$0xf]
  %v39 = vld [vmem:[%s1 + $0x28] sm:$0xf]
  %v40 = vld [vmem:[%s1 + $0x2c] sm:$0xf]
  %v41 = vld [vmem:[%s1 + $0x30] sm:$0xf]
  %v42 = vld [vmem:[%s1 + $0x34] sm:$0xf]
  %v43 = vld [vmem:[%s1 + $0x38] sm:$0xf]
  %v44 = vld [vmem:[%s1 + $0x3c] sm:$0xf]
  %v45 = vld [vmem:[%s1 + $0x40] sm:$0xf]
  %v46 = vld [vmem:[%s1 + $0x44] sm:$0xf]
  %v47 = vld [vmem:[%s1 + $0x48] sm:$0xf]
  %v48 = vld [vmem:[%s1 + $0x4c] sm:$0xf]
  %v49 = vld [vmem:[%s1 + $0x50] sm:$0xf]
  %v50 = vld [vmem:[%s1 + $0x54] sm:$0xf]
  %v51 = vld [vmem:[%s1 + $0x58] sm:$0xf]
  %v52 = vld [vmem:[%s1 + $0x5c] sm:$0xf]
  %v53 = vld [vmem:[%s1 + $0x60] sm:$0xf]
  %v54 = vld [vmem:[%s1 + $0x64] sm:$0xf]
  %v55 = vld [vmem:[%s1 + $0x68] sm:$0xf]
  %v56 = vld [vmem:[%s1 + $0x6c] sm:$0xf]
  %v57 = vld [vmem:[%s1 + $0x70] sm:$0xf]
  %v58 = vld [vmem:[%s1 + $0x74] sm:$0xf]
  %v59 = vld [vmem:[%s1 + $0x78] sm:$0xf]
  %v60 = vld [vmem:[%s1 + $0x7c] sm:$0xf]
  %v61 = vld [vmem:[%s2] sm:$0x1]
  %v63 = vperm.slane %v61, 0
  %v74 = vunpack.c.l.b16 %v20
  %v75 = vunpack.c.h.b16 %v20
  %v76 = vunpack.c.l.b16 %v21
  %v77 = vunpack.c.h.b16 %v21
  %v78 = vunpack.c.l.b16 %v22
  %v79 = vunpack.c.h.b16 %v22
  %v80 = vunpack.c.l.b16 %v23
  %v81 = vunpack.c.h.b16 %v23
  %v82 = vunpack.c.l.b16 %v24
  %v83 = vunpack.c.h.b16 %v24
  %v84 = vunpack.c.l.b16 %v25
  %v85 = vunpack.c.h.b16 %v25
  %v86 = vunpack.c.l.b16 %v26
  %v87 = vunpack.c.h.b16 %v26
  %v88 = vunpack.c.l.b16 %v27
  %v89 = vunpack.c.h.b16 %v27
  %v90 = vunpack.c.l.b16 %v28
  %v91 = vunpack.c.h.b16 %v28
  %v92 = vpack.c.b16 %v76, %v74
  %v93 = vpack.c.b16 %v77, %v75
  %v94 = vpack.c.b16 %v80, %v78
  %v95 = vpack.c.b16 %v81, %v79
  %v96 = vpack.c.b16 %v84, %v82
  %v97 = vpack.c.b16 %v85, %v83
  %v98 = vpack.c.b16 %v88, %v86
  %v99 = vpack.c.b16 %v89, %v87
  %v100 = vpack.c.b16 %v90, %v90
  %v101 = vpack.c.b16 %v91, %v91
  %v144 = vunpack.c.l.b16 %v29
  %v145 = vunpack.c.l.b16 %v30
  %v146 = vunpack.c.l.b16 %v31
  %v147 = vunpack.c.l.b16 %v32
  %v148 = vunpack.c.l.b16 %v33
  %v149 = vunpack.c.l.b16 %v34
  %v150 = vunpack.c.l.b16 %v35
  %v151 = vunpack.c.l.b16 %v36
  %v152 = vunpack.c.l.b16 %v37
  %v153 = vunpack.c.l.b16 %v38
  %v154 = vunpack.c.l.b16 %v39
  %v155 = vunpack.c.l.b16 %v40
  %v156 = vunpack.c.l.b16 %v41
  %v157 = vunpack.c.l.b16 %v42
  %v158 = vunpack.c.l.b16 %v43
  %v159 = vunpack.c.l.b16 %v44
  %v160 = vunpack.c.l.b16 %v45
  %v161 = vunpack.c.l.b16 %v46
  %v162 = vunpack.c.l.b16 %v47
  %v163 = vunpack.c.l.b16 %v48
  %v164 = vunpack.c.l.b16 %v49
  %v165 = vunpack.c.l.b16 %v50
  %v166 = vunpack.c.l.b16 %v51
  %v167 = vunpack.c.l.b16 %v52
  %v168 = vunpack.c.l.b16 %v53
  %v169 = vunpack.c.l.b16 %v54
  %v170 = vunpack.c.l.b16 %v55
  %v171 = vunpack.c.l.b16 %v56
  %v172 = vunpack.c.l.b16 %v57
  %v173 = vunpack.c.l.b16 %v58
  %v174 = vunpack.c.l.b16 %v59
  %v175 = vunpack.c.l.b16 %v60
  %v176 = vpack.c.b16 %v145, %v144
  %v177 = vpack.c.b16 %v147, %v146
  %v178 = vpack.c.b16 %v149, %v148
  %v179 = vpack.c.b16 %v151, %v150
  %v180 = vpack.c.b16 %v153, %v152
  %v181 = vpack.c.b16 %v155, %v154
  %v182 = vpack.c.b16 %v157, %v156
  %v183 = vpack.c.b16 %v159, %v158
  %v184 = vpack.c.b16 %v161, %v160
  %v185 = vpack.c.b16 %v163, %v162
  %v186 = vpack.c.b16 %v165, %v164
  %v187 = vpack.c.b16 %v167, %v166
  %v188 = vpack.c.b16 %v169, %v168
  %v189 = vpack.c.b16 %v171, %v170
  %v190 = vpack.c.b16 %v173, %v172
  %v191 = vpack.c.b16 %v175, %v174
  %208 = vmatpush.bf16.msra.mxu0 %v183
  %209 = vmatpush.bf16.msra.mxu0 %v182
  %210 = vmatpush.bf16.msra.mxu0 %v181
  %211 = vmatpush.bf16.msra.mxu0 %v180
  %212 = vmatpush.bf16.msra.mxu0 %v179
  %213 = vmatpush.bf16.msra.mxu0 %v178
  %214 = vmatpush.bf16.msra.mxu0 %v177
  %215 = vmatpush.bf16.msra.mxu0 %v176
  %216 = vmatmul.bf16.gmra.mxu0 %v92
  %v217 = vpop.f32.mrf.mxu0
  %v218 = vadd.f32 %v63, %v217
  %v219 = vpop.f32.mrf.mxu0
  %v220 = vadd.f32 %v63, %v219
  %221 = vmatmul.bf16.gmra.mxu0 %v94
  %v222 = vpop.f32.mrf.mxu0
  %v223 = vadd.f32 %v63, %v222
  %v224 = vpop.f32.mrf.mxu0
  %v225 = vadd.f32 %v63, %v224
  %226 = vmatmul.bf16.gmra.mxu0 %v96
  %v227 = vpop.f32.mrf.mxu0
  %v228 = vadd.f32 %v63, %v227
  %v229 = vpop.f32.mrf.mxu0
  %v230 = vadd.f32 %v63, %v229
  %231 = vmatmul.bf16.gmra.mxu0 %v98
  %v232 = vpop.f32.mrf.mxu0
  %v233 = vadd.f32 %v63, %v232
  %v234 = vpop.f32.mrf.mxu0
  %v235 = vadd.f32 %v63, %v234
  %236 = vmatmul.bf16.gmra.mxu0 %v100
  %v237 = vpop.f32.mrf.mxu0
  %v238 = vadd.f32 %v63, %v237
  %v239 = vpop.f32.mrf.mxu0
  %240 = vdwg.mxu0
  %241 = vmatpush.bf16.msra.mxu0 %v191
  %242 = vmatpush.bf16.msra.mxu0 %v190
  %243 = vmatpush.bf16.msra.mxu0 %v189
  %244 = vmatpush.bf16.msra.mxu0 %v188
  %245 = vmatpush.bf16.msra.mxu0 %v187
  %246 = vmatpush.bf16.msra.mxu0 %v186
  %247 = vmatpush.bf16.msra.mxu0 %v185
  %248 = vmatpush.bf16.msra.mxu0 %v184
  %249 = vmatmul.bf16.gmra.mxu0 %v93
  %v250 = vpop.f32.mrf.mxu0
  %v251 = vadd.f32 %v218, %v250
  %v252 = vpop.f32.mrf.mxu0
  %v253 = vadd.f32 %v220, %v252
  %254 = vmatmul.bf16.gmra.mxu0 %v95
  %v255 = vpop.f32.mrf.mxu0
  %v256 = vadd.f32 %v223, %v255
  %v257 = vpop.f32.mrf.mxu0
  %v258 = vadd.f32 %v225, %v257
  %259 = vmatmul.bf16.gmra.mxu0 %v97
  %v260 = vpop.f32.mrf.mxu0
  %v261 = vadd.f32 %v228, %v260
  %v262 = vpop.f32.mrf.mxu0
  %v263 = vadd.f32 %v230, %v262
  %264 = vmatmul.bf16.gmra.mxu0 %v99
  %v265 = vpop.f32.mrf.mxu0
  %v266 = vadd.f32 %v233, %v265
  %v267 = vpop.f32.mrf.mxu0
  %v268 = vadd.f32 %v235, %v267
  %269 = vmatmul.bf16.gmra.mxu0 %v101
  %v270 = vpop.f32.mrf.mxu0
  %v271 = vadd.f32 %v238, %v270
  %v272 = vpop.f32.mrf.mxu0
  %273 = vdwg.mxu0
  %vm274 = vcmask 261120
  %v275 = vsel %vm274, %v251, 0.0
  %v276 = vsel %vm274, %v253, 0.0
  %v277 = vadd.f32 %v275, %v276
  %v278 = vsel %vm274, %v256, 0.0
  %v279 = vadd.f32 %v277, %v278
  %v280 = vsel %vm274, %v258, 0.0
  %v281 = vadd.f32 %v279, %v280
  %v282 = vsel %vm274, %v261, 0.0
  %v283 = vadd.f32 %v281, %v282
  %v284 = vsel %vm274, %v263, 0.0
  %v285 = vadd.f32 %v283, %v284
  %v286 = vsel %vm274, %v266, 0.0
  %v287 = vadd.f32 %v285, %v286
  %v288 = vsel %vm274, %v268, 0.0
  %v289 = vadd.f32 %v287, %v288
  %v290 = vsel %vm274, %v271, 0.0
  %v291 = vadd.f32 %v289, %v290
  %v292 = vrot.slane %v291, 4
  %v293 = vadd.f32 %v291, %v292
  %v294 = vrot.slane %v293, 2
  %v295 = vadd.f32 %v293, %v294
  %v296 = vrot.slane %v295, 1
  %v297 = vadd.f32 %v295, %v296
  %v298 = vrcp.pop 72.0
  %v299 = vmul.f32 72.0, %v298
  %v300 = vsub.f32 1.0, %v299
  %v301 = vmul.f32 %v298, %v300
  %v302 = vadd.f32 %v298, %v301
  %vm303 = vweird.f32 %v298
  %v304 = vsel %vm303, %v298, %v302
  %v305 = vmul.f32 %v297, %v304
  %v306 = vsub.f32 %v251, %v305
  %v307 = vsub.f32 %v253, %v305
  %v308 = vsub.f32 %v256, %v305
  %v309 = vsub.f32 %v258, %v305
  %v310 = vsub.f32 %v261, %v305
  %v311 = vsub.f32 %v263, %v305
  %v312 = vsub.f32 %v266, %v305
  %v313 = vsub.f32 %v268, %v305
  %v314 = vsub.f32 %v271, %v305
  %v315 = vmul.f32 %v306, %v306
  %v316 = vmul.f32 %v307, %v307
  %v317 = vmul.f32 %v308, %v308
  %v318 = vmul.f32 %v309, %v309
  %v319 = vmul.f32 %v310, %v310
  %v320 = vmul.f32 %v311, %v311
  %v321 = vmul.f32 %v312, %v312
  %v322 = vmul.f32 %v313, %v313
  %v323 = vmul.f32 %v314, %v314
  %v324 = vsel %vm274, %v315, 0.0
  %v325 = vsel %vm274, %v316, 0.0
  %v326 = vadd.f32 %v324, %v325
  %v327 = vsel %vm274, %v317, 0.0
  %v328 = vadd.f32 %v326, %v327
  %v329 = vsel %vm274, %v318, 0.0
  %v330 = vadd.f32 %v328, %v329
  %v331 = vsel %vm274, %v319, 0.0
  %v332 = vadd.f32 %v330, %v331
  %v333 = vsel %vm274, %v320, 0.0
  %v334 = vadd.f32 %v332, %v333
  %v335 = vsel %vm274, %v321, 0.0
  %v336 = vadd.f32 %v334, %v335
  %v337 = vsel %vm274, %v322, 0.0
  %v338 = vadd.f32 %v336, %v337
  %v339 = vsel %vm274, %v323, 0.0
  %v340 = vadd.f32 %v338, %v339
  %v341 = vrot.slane %v340, 4
  %v342 = vadd.f32 %v340, %v341
  %v343 = vrot.slane %v342, 2
  %v344 = vadd.f32 %v342, %v343
  %v345 = vrot.slane %v344, 1
  %v346 = vadd.f32 %v344, %v345
  %v347 = vmul.f32 %v346, %v304
  %v348 = vadd.f32 %v347, 1e-05
  %v349 = vrsqrt.pop %v348
  %v350 = vmul.f32 %v349, %v348
  %v351 = vmul.f32 %v350, %v349
  %v352 = vmul.f32 0.5, %v351
  %v353 = vsub.f32 1.5, %v352
  %v354 = vmul.f32 %v349, %v353
  %vm355 = vweird.f32 %v348
  %vm356 = vweird.f32 %v349
  %vm357 = vmor %vm355, %vm356
  %v358 = vsel %vm357, %v349, %v354
  %v359 = vmul.f32 %v306, %v358
  %v360 = vmul.f32 %v307, %v358
  %v361 = vmul.f32 %v308, %v358
  %v362 = vmul.f32 %v309, %v358
  %v363 = vmul.f32 %v310, %v358
  %v364 = vmul.f32 %v311, %v358
  %v365 = vmul.f32 %v312, %v358
  %v366 = vmul.f32 %v313, %v358
  %v367 = vmul.f32 %v314, %v358
  %v368 = vld [vmem:[%s3] sm:$0x1]
  %v370 = vperm.slane %v368, 0
  %v372 = vmul.f32 %v359, %v370
  %v373 = vmul.f32 %v360, %v370
  %v374 = vmul.f32 %v361, %v370
  %v375 = vmul.f32 %v362, %v370
  %v376 = vmul.f32 %v363, %v370
  %v377 = vmul.f32 %v364, %v370
  %v378 = vmul.f32 %v365, %v370
  %v379 = vmul.f32 %v366, %v370
  %v380 = vmul.f32 %v367, %v370
  %v381 = vld [vmem:[%s4] sm:$0x1]
  %v383 = vperm.slane %v381, 0
  %v385 = vadd.f32 %v372, %v383
  %v386 = vadd.f32 %v373, %v383
  %v387 = vadd.f32 %v374, %v383
  %v388 = vadd.f32 %v375, %v383
  %v389 = vadd.f32 %v376, %v383
  %v390 = vadd.f32 %v377, %v383
  %v391 = vadd.f32 %v378, %v383
  %v392 = vadd.f32 %v379, %v383
  %v393 = vadd.f32 %v380, %v383
  %v394 = vtanh.pop %v385
  %v395 = vtanh.pop %v386
  %v396 = vtanh.pop %v387
  %v397 = vtanh.pop %v388
  %v398 = vtanh.pop %v389
  %v399 = vtanh.pop %v390
  %v400 = vtanh.pop %v391
  %v401 = vtanh.pop %v392
  %v402 = vtanh.pop %v393
  %v403 = vpack.c.bf16 %v394, %v394
  %v404 = vpack.c.bf16 %v395, %v395
  %v405 = vpack.c.bf16 %v396, %v396
  %v406 = vpack.c.bf16 %v397, %v397
  %v407 = vpack.c.bf16 %v398, %v398
  %v408 = vpack.c.bf16 %v399, %v399
  %v409 = vpack.c.bf16 %v400, %v400
  %v410 = vpack.c.bf16 %v401, %v401
  %v411 = vpack.c.bf16 %v402, %v402
  %vm412 = vcmask 257024
  %413 = vst.msk [vmem:[%s5] sm:$0xf] %vm412, %v403
  %414 = vst.msk [vmem:[%s5 + $0x4] sm:$0xf] %vm412, %v404
  %415 = vst.msk [vmem:[%s5 + $0x8] sm:$0xf] %vm412, %v405
  %416 = vst.msk [vmem:[%s5 + $0xc] sm:$0xf] %vm412, %v406
  %417 = vst.msk [vmem:[%s5 + $0x10] sm:$0xf] %vm412, %v407
  %418 = vst.msk [vmem:[%s5 + $0x14] sm:$0xf] %vm412, %v408
  %419 = vst.msk [vmem:[%s5 + $0x18] sm:$0xf] %vm412, %v409
  %420 = vst.msk [vmem:[%s5 + $0x1c] sm:$0xf] %vm412, %v410
  %421 = vst.msk [vmem:[%s5 + $0x20] sm:$0xf] %vm412, %v411
  // Predicated region
  $region22: #{cnn_forward.5} parent=0 // pred_check
    _
  $region23: #{cnn_forward.5} parent=0 // pred_check_branch
    %423 = sbr.rel (0) target = $region25
  $region24: #{cnn_forward.5} parent=0 // pred_region
    _
  $region25: #{cnn_forward.5} parent=0 // pred_fallthru
    _
  // Predicated region
  $region26: #{cnn_forward.5} parent=0 // pred_check
    _
  $region27: #{cnn_forward.5} parent=0 // pred_check_branch
    %425 = sbr.rel (0) target = $region29
  $region28: #{cnn_forward.5} parent=0 // pred_region
    _
  $region29: #{cnn_forward.5} parent=0 // pred_fallthru
    _

// kernel: cnn_forward.6
$region0: #{cnn_forward.6}
  #allocation0 [shape = 'u32[]', space=smem, size = 0x4, offset = 0x4, fixed_abs, tag = 'smem constant byte address 0x4 - core index']
  #allocation1 [shape = 'u32[72,128]{1,0:T(1,128)}', space=vmem, size = 0x9000, scoped, tag = 'internal scratch']
  %s0 = inlined_call_operand.vmem [shape: bf16[8,512], index: 0, kind: input, shape index: {}]
  %s1 = inlined_call_operand.vmem [shape: bf16[512,64], index: 1, kind: input, shape index: {}]
  %s2 = inlined_call_operand.vmem [shape: f32[1,64], index: 2, kind: input, shape index: {}]
  %s3 = inlined_call_operand.vmem [shape: bf16[8,64], index: 3, kind: output, shape index: {}]
  %s4 = sld [smem:[#allocation0]]
  $region22: #{cnn_forward.6} parent=0
    _
  %s6 = ssub.s32 1, %s4
  %s7 = scalar_select 0, %s6, %s4
  // Predicated region
  $region2: #{cnn_forward.6} parent=0 // pred_check
    _
  $region3: #{cnn_forward.6} parent=0 // pred_check_branch
    %9 = sbr.rel (0) target = $region5
  $region4: #{cnn_forward.6} parent=0 // pred_region
    _
  $region5: #{cnn_forward.6} parent=0 // pred_fallthru
    _
  // Predicated region
  $region6: #{cnn_forward.6} parent=0 // pred_check
    _
  $region7: #{cnn_forward.6} parent=0 // pred_check_branch
    %11 = sbr.rel (0) target = $region9
  $region8: #{cnn_forward.6} parent=0 // pred_region
    _
  $region9: #{cnn_forward.6} parent=0 // pred_fallthru
    _
  // Predicated region
  $region10: #{cnn_forward.6} parent=0 // pred_check
    _
  $region11: #{cnn_forward.6} parent=0 // pred_check_branch
    %13 = sbr.rel (0) target = $region13
  $region12: #{cnn_forward.6} parent=0 // pred_region
    _
  $region13: #{cnn_forward.6} parent=0 // pred_fallthru
    _
  %v14 = vld [vmem:[%s0] sm:$0xff]
  %v15 = vld [vmem:[%s0 + $0x8] sm:$0xff]
  %v16 = vld [vmem:[%s1] sm:$0xf]
  %v17 = vld [vmem:[%s1 + $0x4] sm:$0xf]
  %v18 = vld [vmem:[%s1 + $0x8] sm:$0xf]
  %v19 = vld [vmem:[%s1 + $0xc] sm:$0xf]
  %v20 = vld [vmem:[%s1 + $0x10] sm:$0xf]
  %v21 = vld [vmem:[%s1 + $0x14] sm:$0xf]
  %v22 = vld [vmem:[%s1 + $0x18] sm:$0xf]
  %v23 = vld [vmem:[%s1 + $0x1c] sm:$0xf]
  %v24 = vld [vmem:[%s1 + $0x20] sm:$0xf]
  %v25 = vld [vmem:[%s1 + $0x24] sm:$0xf]
  %v26 = vld [vmem:[%s1 + $0x28] sm:$0xf]
  %v27 = vld [vmem:[%s1 + $0x2c] sm:$0xf]
  %v28 = vld [vmem:[%s1 + $0x30] sm:$0xf]
  %v29 = vld [vmem:[%s1 + $0x34] sm:$0xf]
  %v30 = vld [vmem:[%s1 + $0x38] sm:$0xf]
  %v31 = vld [vmem:[%s1 + $0x3c] sm:$0xf]
  %v32 = vld [vmem:[%s1 + $0x40] sm:$0xf]
  %v33 = vld [vmem:[%s1 + $0x44] sm:$0xf]
  %v34 = vld [vmem:[%s1 + $0x48] sm:$0xf]
  %v35 = vld [vmem:[%s1 + $0x4c] sm:$0xf]
  %v36 = vld [vmem:[%s1 + $0x50] sm:$0xf]
  %v37 = vld [vmem:[%s1 + $0x54] sm:$0xf]
  %v38 = vld [vmem:[%s1 + $0x58] sm:$0xf]
  %v39 = vld [vmem:[%s1 + $0x5c] sm:$0xf]
  %v40 = vld [vmem:[%s1 + $0x60] sm:$0xf]
  %v41 = vld [vmem:[%s1 + $0x64] sm:$0xf]
  %v42 = vld [vmem:[%s1 + $0x68] sm:$0xf]
  %v43 = vld [vmem:[%s1 + $0x6c] sm:$0xf]
  %v44 = vld [vmem:[%s1 + $0x70] sm:$0xf]
  %v45 = vld [vmem:[%s1 + $0x74] sm:$0xf]
  %v46 = vld [vmem:[%s1 + $0x78] sm:$0xf]
  %v47 = vld [vmem:[%s1 + $0x7c] sm:$0xf]
  %v48 = vld [vmem:[%s1 + $0x80] sm:$0xf]
  %v49 = vld [vmem:[%s1 + $0x84] sm:$0xf]
  %v50 = vld [vmem:[%s1 + $0x88] sm:$0xf]
  %v51 = vld [vmem:[%s1 + $0x8c] sm:$0xf]
  %v52 = vld [vmem:[%s1 + $0x90] sm:$0xf]
  %v53 = vld [vmem:[%s1 + $0x94] sm:$0xf]
  %v54 = vld [vmem:[%s1 + $0x98] sm:$0xf]
  %v55 = vld [vmem:[%s1 + $0x9c] sm:$0xf]
  %v56 = vld [vmem:[%s1 + $0xa0] sm:$0xf]
  %v57 = vld [vmem:[%s1 + $0xa4] sm:$0xf]
  %v58 = vld [vmem:[%s1 + $0xa8] sm:$0xf]
  %v59 = vld [vmem:[%s1 + $0xac] sm:$0xf]
  %v60 = vld [vmem:[%s1 + $0xb0] sm:$0xf]
  %v61 = vld [vmem:[%s1 + $0xb4] sm:$0xf]
  %v62 = vld [vmem:[%s1 + $0xb8] sm:$0xf]
  %v63 = vld [vmem:[%s1 + $0xbc] sm:$0xf]
  %v64 = vld [vmem:[%s1 + $0xc0] sm:$0xf]
  %v65 = vld [vmem:[%s1 + $0xc4] sm:$0xf]
  %v66 = vld [vmem:[%s1 + $0xc8] sm:$0xf]
  %v67 = vld [vmem:[%s1 + $0xcc] sm:$0xf]
  %v68 = vld [vmem:[%s1 + $0xd0] sm:$0xf]
  %v69 = vld [vmem:[%s1 + $0xd4] sm:$0xf]
  %v70 = vld [vmem:[%s1 + $0xd8] sm:$0xf]
  %v71 = vld [vmem:[%s1 + $0xdc] sm:$0xf]
  %v72 = vld [vmem:[%s1 + $0xe0] sm:$0xf]
  %v73 = vld [vmem:[%s1 + $0xe4] sm:$0xf]
  %v74 = vld [vmem:[%s1 + $0xe8] sm:$0xf]
  %v75 = vld [vmem:[%s1 + $0xec] sm:$0xf]
  %v76 = vld [vmem:[%s1 + $0xf0] sm:$0xf]
  %v77 = vld [vmem:[%s1 + $0xf4] sm:$0xf]
  %v78 = vld [vmem:[%s1 + $0xf8] sm:$0xf]
  %v79 = vld [vmem:[%s1 + $0xfc] sm:$0xf]
  %v80 = vld [vmem:[%s2] sm:$0x1]
  %v82 = vperm.slane %v80, 0
  %v86 = vunpack.c.l.b16 %v14
  %v87 = vunpack.c.h.b16 %v14
  %v88 = vunpack.c.l.b16 %v15
  %v89 = vunpack.c.h.b16 %v15
  %v90 = vpack.c.b16 %v86, %v86
  %v91 = vpack.c.b16 %v87, %v87
  %v92 = vpack.c.b16 %v88, %v88
  %v93 = vpack.c.b16 %v89, %v89
  %v162 = vunpack.c.l.b16 %v16
  %v163 = vunpack.c.l.b16 %v17
  %v164 = vunpack.c.l.b16 %v18
  %v165 = vunpack.c.l.b16 %v19
  %v166 = vunpack.c.l.b16 %v20
  %v167 = vunpack.c.l.b16 %v21
  %v168 = vunpack.c.l.b16 %v22
  %v169 = vunpack.c.l.b16 %v23
  %v170 = vunpack.c.l.b16 %v24
  %v171 = vunpack.c.l.b16 %v25
  %v172 = vunpack.c.l.b16 %v26
  %v173 = vunpack.c.l.b16 %v27
  %v174 = vunpack.c.l.b16 %v28
  %v175 = vunpack.c.l.b16 %v29
  %v176 = vunpack.c.l.b16 %v30
  %v177 = vunpack.c.l.b16 %v31
  %v178 = vunpack.c.l.b16 %v32
  %v179 = vunpack.c.l.b16 %v33
  %v180 = vunpack.c.l.b16 %v34
  %v181 = vunpack.c.l.b16 %v35
  %v182 = vunpack.c.l.b16 %v36
  %v183 = vunpack.c.l.b16 %v37
  %v184 = vunpack.c.l.b16 %v38
  %v185 = vunpack.c.l.b16 %v39
  %v186 = vunpack.c.l.b16 %v40
  %v187 = vunpack.c.l.b16 %v41
  %v188 = vunpack.c.l.b16 %v42
  %v189 = vunpack.c.l.b16 %v43
  %v190 = vunpack.c.l.b16 %v44
  %v191 = vunpack.c.l.b16 %v45
  %v192 = vunpack.c.l.b16 %v46
  %v193 = vunpack.c.l.b16 %v47
  %v194 = vunpack.c.l.b16 %v48
  %v195 = vunpack.c.l.b16 %v49
  %v196 = vunpack.c.l.b16 %v50
  %v197 = vunpack.c.l.b16 %v51
  %v198 = vunpack.c.l.b16 %v52
  %v199 = vunpack.c.l.b16 %v53
  %v200 = vunpack.c.l.b16 %v54
  %v201 = vunpack.c.l.b16 %v55
  %v202 = vunpack.c.l.b16 %v56
  %v203 = vunpack.c.l.b16 %v57
  %v204 = vunpack.c.l.b16 %v58
  %v205 = vunpack.c.l.b16 %v59
  %v206 = vunpack.c.l.b16 %v60
  %v207 = vunpack.c.l.b16 %v61
  %v208 = vunpack.c.l.b16 %v62
  %v209 = vunpack.c.l.b16 %v63
  %v210 = vunpack.c.l.b16 %v64
  %v211 = vunpack.c.l.b16 %v65
  %v212 = vunpack.c.l.b16 %v66
  %v213 = vunpack.c.l.b16 %v67
  %v214 = vunpack.c.l.b16 %v68
  %v215 = vunpack.c.l.b16 %v69
  %v216 = vunpack.c.l.b16 %v70
  %v217 = vunpack.c.l.b16 %v71
  %v218 = vunpack.c.l.b16 %v72
  %v219 = vunpack.c.l.b16 %v73
  %v220 = vunpack.c.l.b16 %v74
  %v221 = vunpack.c.l.b16 %v75
  %v222 = vunpack.c.l.b16 %v76
  %v223 = vunpack.c.l.b16 %v77
  %v224 = vunpack.c.l.b16 %v78
  %v225 = vunpack.c.l.b16 %v79
  %v226 = vpack.c.b16 %v163, %v162
  %v227 = vpack.c.b16 %v165, %v164
  %v228 = vpack.c.b16 %v167, %v166
  %v229 = vpack.c.b16 %v169, %v168
  %v230 = vpack.c.b16 %v171, %v170
  %v231 = vpack.c.b16 %v173, %v172
  %v232 = vpack.c.b16 %v175, %v174
  %v233 = vpack.c.b16 %v177, %v176
  %v234 = vpack.c.b16 %v179, %v178
  %v235 = vpack.c.b16 %v181, %v180
  %v236 = vpack.c.b16 %v183, %v182
  %v237 = vpack.c.b16 %v185, %v184
  %v238 = vpack.c.b16 %v187, %v186
  %v239 = vpack.c.b16 %v189, %v188
  %v240 = vpack.c.b16 %v191, %v190
  %v241 = vpack.c.b16 %v193, %v192
  %v242 = vpack.c.b16 %v195, %v194
  %v243 = vpack.c.b16 %v197, %v196
  %v244 = vpack.c.b16 %v199, %v198
  %v245 = vpack.c.b16 %v201, %v200
  %v246 = vpack.c.b16 %v203, %v202
  %v247 = vpack.c.b16 %v205, %v204
  %v248 = vpack.c.b16 %v207, %v206
  %v249 = vpack.c.b16 %v209, %v208
  %v250 = vpack.c.b16 %v211, %v210
  %v251 = vpack.c.b16 %v213, %v212
  %v252 = vpack.c.b16 %v215, %v214
  %v253 = vpack.c.b16 %v217, %v216
  %v254 = vpack.c.b16 %v219, %v218
  %v255 = vpack.c.b16 %v221, %v220
  %v256 = vpack.c.b16 %v223, %v222
  %v257 = vpack.c.b16 %v225, %v224
  %290 = vmatpush.bf16.msra.mxu0 %v233
  %291 = vmatpush.bf16.msra.mxu0 %v232
  %292 = vmatpush.bf16.msra.mxu0 %v231
  %293 = vmatpush.bf16.msra.mxu0 %v230
  %294 = vmatpush.bf16.msra.mxu0 %v229
  %295 = vmatpush.bf16.msra.mxu0 %v228
  %296 = vmatpush.bf16.msra.mxu0 %v227
  %297 = vmatpush.bf16.msra.mxu0 %v226
  %298 = vmatmul.bf16.gmra.mxu0 %v90
  %v299 = vpop.f32.mrf.mxu0
  %v300 = vadd.f32 %v82, %v299
  %v301 = vpop.f32.mrf.mxu0
  %302 = vdwg.mxu0
  %303 = vmatpush.bf16.msra.mxu0 %v241
  %304 = vmatpush.bf16.msra.mxu0 %v240
  %305 = vmatpush.bf16.msra.mxu0 %v239
  %306 = vmatpush.bf16.msra.mxu0 %v238
  %307 = vmatpush.bf16.msra.mxu0 %v237
  %308 = vmatpush.bf16.msra.mxu0 %v236
  %309 = vmatpush.bf16.msra.mxu0 %v235
  %310 = vmatpush.bf16.msra.mxu0 %v234
  %311 = vmatmul.bf16.gmra.mxu0 %v91
  %v312 = vpop.f32.mrf.mxu0
  %v313 = vadd.f32 %v300, %v312
  %v314 = vpop.f32.mrf.mxu0
  %315 = vdwg.mxu0
  %316 = vmatpush.bf16.msra.mxu0 %v249
  %317 = vmatpush.bf16.msra.mxu0 %v248
  %318 = vmatpush.bf16.msra.mxu0 %v247
  %319 = vmatpush.bf16.msra.mxu0 %v246
  %320 = vmatpush.bf16.msra.mxu0 %v245
  %321 = vmatpush.bf16.msra.mxu0 %v244
  %322 = vmatpush.bf16.msra.mxu0 %v243
  %323 = vmatpush.bf16.msra.mxu0 %v242
  %324 = vmatmul.bf16.gmra.mxu0 %v92
  %v325 = vpop.f32.mrf.mxu0
  %v326 = vadd.f32 %v313, %v325
  %v327 = vpop.f32.mrf.mxu0
  %328 = vdwg.mxu0
  %329 = vmatpush.bf16.msra.mxu0 %v257
  %330 = vmatpush.bf16.msra.mxu0 %v256
  %331 = vmatpush.bf16.msra.mxu0 %v255
  %332 = vmatpush.bf16.msra.mxu0 %v254
  %333 = vmatpush.bf16.msra.mxu0 %v253
  %334 = vmatpush.bf16.msra.mxu0 %v252
  %335 = vmatpush.bf16.msra.mxu0 %v251
  %336 = vmatpush.bf16.msra.mxu0 %v250
  %337 = vmatmul.bf16.gmra.mxu0 %v93
  %v338 = vpop.f32.mrf.mxu0
  %v339 = vadd.f32 %v326, %v338
  %v340 = vpop.f32.mrf.mxu0
  %341 = vdwg.mxu0
  %v342 = vtanh.pop %v339
  %v343 = vpack.c.bf16 %v342, %v342
  %vm344 = vcmask 519168
  %345 = vst.msk [vmem:[%s3] sm:$0xf] %vm344, %v343
  // Predicated region
  $region14: #{cnn_forward.6} parent=0 // pred_check
    _
  $region15: #{cnn_forward.6} parent=0 // pred_check_branch
    %347 = sbr.rel (0) target = $region17
  $region16: #{cnn_forward.6} parent=0 // pred_region
    _
  $region17: #{cnn_forward.6} parent=0 // pred_fallthru
    _
  // Predicated region
  $region18: #{cnn_forward.6} parent=0 // pred_check
    _
  $region19: #{cnn_forward.6} parent=0 // pred_check_branch
    %349 = sbr.rel (0) target = $region21
  $region20: #{cnn_forward.6} parent=0 // pred_region
    _
  $region21: #{cnn_forward.6} parent=0 // pred_fallthru
    _

// kernel: cnn_forward.7
$region0: #{cnn_forward.7}
  #allocation0 [shape = 'u32[]', space=smem, size = 0x4, offset = 0x4, fixed_abs, tag = 'smem constant byte address 0x4 - core index']
  #allocation1 [shape = 'u32[72,128]{1,0:T(1,128)}', space=vmem, size = 0x9000, scoped, tag = 'internal scratch']
  %s0 = inlined_call_operand.vmem [shape: bf16[2,256], index: 0, kind: input, shape index: {}]
  %s1 = inlined_call_operand.vmem [shape: bf16[256,128], index: 1, kind: input, shape index: {}]
  %s2 = inlined_call_operand.vmem [shape: f32[1,128], index: 2, kind: input, shape index: {}]
  %s3 = inlined_call_operand.vmem [shape: bf16[128,16], index: 3, kind: input, shape index: {}]
  %s4 = inlined_call_operand.vmem [shape: f32[1,16], index: 4, kind: input, shape index: {}]
  %s5 = inlined_call_operand.vmem [shape: bf16[16,8], index: 5, kind: input, shape index: {}]
  %s6 = inlined_call_operand.vmem [shape: f32[1,8], index: 6, kind: input, shape index: {}]
  %s7 = inlined_call_operand.hbm [shape: f32[2,8], index: 7, kind: output, shape index: {}]
  %s8 = sld [smem:[#allocation0]]
  $region38: #{cnn_forward.7} parent=0
    _
  %s10 = ssub.s32 1, %s8
  %s11 = scalar_select 0, %s10, %s8
  $region1: #{cnn_forward.7} parent=0
    #allocation2 [shape = 'u8[1024]{0}', space=vmem, size = 0x400, scoped, tag = 'output window, operand 0, single buffered']
    #allocation3 [shape = 's32[1]{0}', space=sflag, size = 0x4, scoped, tag = 'scoped memory for cnn_forward.7']
    %12 = vsyncpa [#allocation3], 0
    // Predicated region
    $region2: #{cnn_forward.7} parent=1 // pred_check
      _
    $region3: #{cnn_forward.7} parent=1 // pred_check_branch
      %14 = sbr.rel (0) target = $region5
    $region4: #{cnn_forward.7} parent=1 // pred_region
      _
    $region5: #{cnn_forward.7} parent=1 // pred_fallthru
      _
    // Predicated region
    $region6: #{cnn_forward.7} parent=1 // pred_check
      _
    $region7: #{cnn_forward.7} parent=1 // pred_check_branch
      %16 = sbr.rel (0) target = $region9
    $region8: #{cnn_forward.7} parent=1 // pred_region
      _
    $region9: #{cnn_forward.7} parent=1 // pred_fallthru
      _
    // Predicated region
    $region10: #{cnn_forward.7} parent=1 // pred_check
      _
    $region11: #{cnn_forward.7} parent=1 // pred_check_branch
      %18 = sbr.rel (0) target = $region13
    $region12: #{cnn_forward.7} parent=1 // pred_region
      _
    $region13: #{cnn_forward.7} parent=1 // pred_fallthru
      _
    // Predicated region
    $region14: #{cnn_forward.7} parent=1 // pred_check
      _
    $region15: #{cnn_forward.7} parent=1 // pred_check_branch
      %20 = sbr.rel (0) target = $region17
    $region16: #{cnn_forward.7} parent=1 // pred_region
      _
    $region17: #{cnn_forward.7} parent=1 // pred_fallthru
      _
    // Predicated region
    $region18: #{cnn_forward.7} parent=1 // pred_check
      _
    $region19: #{cnn_forward.7} parent=1 // pred_check_branch
      %22 = sbr.rel (0) target = $region21
    $region20: #{cnn_forward.7} parent=1 // pred_region
      _
    $region21: #{cnn_forward.7} parent=1 // pred_fallthru
      _
    // Predicated region
    $region22: #{cnn_forward.7} parent=1 // pred_check
      _
    $region23: #{cnn_forward.7} parent=1 // pred_check_branch
      %24 = sbr.rel (0) target = $region25
    $region24: #{cnn_forward.7} parent=1 // pred_region
      _
    $region25: #{cnn_forward.7} parent=1 // pred_fallthru
      _
    // Predicated region
    $region26: #{cnn_forward.7} parent=1 // pred_check
      _
    $region27: #{cnn_forward.7} parent=1 // pred_check_branch
      %26 = sbr.rel (0) target = $region29
    $region28: #{cnn_forward.7} parent=1 // pred_region
      _
    $region29: #{cnn_forward.7} parent=1 // pred_fallthru
      _
    %v28 = vld [vmem:[%s0] sm:$0x3]
    %v29 = vld [vmem:[%s1] sm:$0xf]
    %v30 = vld [vmem:[%s1 + $0x4] sm:$0xf]
    %v31 = vld [vmem:[%s1 + $0x8] sm:$0xf]
    %v32 = vld [vmem:[%s1 + $0xc] sm:$0xf]
    %v33 = vld [vmem:[%s1 + $0x10] sm:$0xf]
    %v34 = vld [vmem:[%s1 + $0x14] sm:$0xf]
    %v35 = vld [vmem:[%s1 + $0x18] sm:$0xf]
    %v36 = vld [vmem:[%s1 + $0x1c] sm:$0xf]
    %v37 = vld [vmem:[%s1 + $0x20] sm:$0xf]
    %v38 = vld [vmem:[%s1 + $0x24] sm:$0xf]
    %v39 = vld [vmem:[%s1 + $0x28] sm:$0xf]
    %v40 = vld [vmem:[%s1 + $0x2c] sm:$0xf]
    %v41 = vld [vmem:[%s1 + $0x30] sm:$0xf]
    %v42 = vld [vmem:[%s1 + $0x34] sm:$0xf]
    %v43 = vld [vmem:[%s1 + $0x38] sm:$0xf]
    %v44 = vld [vmem:[%s1 + $0x3c] sm:$0xf]
    %v45 = vld [vmem:[%s1 + $0x40] sm:$0xf]
    %v46 = vld [vmem:[%s1 + $0x44] sm:$0xf]
    %v47 = vld [vmem:[%s1 + $0x48] sm:$0xf]
    %v48 = vld [vmem:[%s1 + $0x4c] sm:$0xf]
    %v49 = vld [vmem:[%s1 + $0x50] sm:$0xf]
    %v50 = vld [vmem:[%s1 + $0x54] sm:$0xf]
    %v51 = vld [vmem:[%s1 + $0x58] sm:$0xf]
    %v52 = vld [vmem:[%s1 + $0x5c] sm:$0xf]
    %v53 = vld [vmem:[%s1 + $0x60] sm:$0xf]
    %v54 = vld [vmem:[%s1 + $0x64] sm:$0xf]
    %v55 = vld [vmem:[%s1 + $0x68] sm:$0xf]
    %v56 = vld [vmem:[%s1 + $0x6c] sm:$0xf]
    %v57 = vld [vmem:[%s1 + $0x70] sm:$0xf]
    %v58 = vld [vmem:[%s1 + $0x74] sm:$0xf]
    %v59 = vld [vmem:[%s1 + $0x78] sm:$0xf]
    %v60 = vld [vmem:[%s1 + $0x7c] sm:$0xf]
    %v61 = vld [vmem:[%s2] sm:$0x1]
    %v63 = vperm.slane %v61, 0
    %66 = vst [vmem:[#allocation1] ss:$9 sm:$0xff] %v28
    %v67 = vld [vmem:[#allocation1] sm:$0xff]
    %v68 = vld [vmem:[#allocation1 + $0x9] sm:$0xff]
    %v103 = vunpack.c.l.b16 %v29
    %v104 = vunpack.c.l.b16 %v30
    %v105 = vunpack.c.l.b16 %v31
    %v106 = vunpack.c.l.b16 %v32
    %v107 = vunpack.c.l.b16 %v33
    %v108 = vunpack.c.l.b16 %v34
    %v109 = vunpack.c.l.b16 %v35
    %v110 = vunpack.c.l.b16 %v36
    %v111 = vunpack.c.l.b16 %v37
    %v112 = vunpack.c.l.b16 %v38
    %v113 = vunpack.c.l.b16 %v39
    %v114 = vunpack.c.l.b16 %v40
    %v115 = vunpack.c.l.b16 %v41
    %v116 = vunpack.c.l.b16 %v42
    %v117 = vunpack.c.l.b16 %v43
    %v118 = vunpack.c.l.b16 %v44
    %v119 = vunpack.c.l.b16 %v45
    %v120 = vunpack.c.l.b16 %v46
    %v121 = vunpack.c.l.b16 %v47
    %v122 = vunpack.c.l.b16 %v48
    %v123 = vunpack.c.l.b16 %v49
    %v124 = vunpack.c.l.b16 %v50
    %v125 = vunpack.c.l.b16 %v51
    %v126 = vunpack.c.l.b16 %v52
    %v127 = vunpack.c.l.b16 %v53
    %v128 = vunpack.c.l.b16 %v54
    %v129 = vunpack.c.l.b16 %v55
    %v130 = vunpack.c.l.b16 %v56
    %v131 = vunpack.c.l.b16 %v57
    %v132 = vunpack.c.l.b16 %v58
    %v133 = vunpack.c.l.b16 %v59
    %v134 = vunpack.c.l.b16 %v60
    %v135 = vpack.c.b16 %v104, %v103
    %v136 = vpack.c.b16 %v106, %v105
    %v137 = vpack.c.b16 %v108, %v107
    %v138 = vpack.c.b16 %v110, %v109
    %v139 = vpack.c.b16 %v112, %v111
    %v140 = vpack.c.b16 %v114, %v113
    %v141 = vpack.c.b16 %v116, %v115
    %v142 = vpack.c.b16 %v118, %v117
    %v143 = vpack.c.b16 %v120, %v119
    %v144 = vpack.c.b16 %v122, %v121
    %v145 = vpack.c.b16 %v124, %v123
    %v146 = vpack.c.b16 %v126, %v125
    %v147 = vpack.c.b16 %v128, %v127
    %v148 = vpack.c.b16 %v130, %v129
    %v149 = vpack.c.b16 %v132, %v131
    %v150 = vpack.c.b16 %v134, %v133
    %167 = vmatpush.bf16.msra.mxu0 %v142
    %168 = vmatpush.bf16.msra.mxu0 %v141
    %169 = vmatpush.bf16.msra.mxu0 %v140
    %170 = vmatpush.bf16.msra.mxu0 %v139
    %171 = vmatpush.bf16.msra.mxu0 %v138
    %172 = vmatpush.bf16.msra.mxu0 %v137
    %173 = vmatpush.bf16.msra.mxu0 %v136
    %174 = vmatpush.bf16.msra.mxu0 %v135
    %175 = vmatmul.bf16.gmra.mxu0 %v67
    %v176 = vpop.f32.mrf.mxu0
    %v177 = vadd.f32 %v63, %v176
    %v178 = vpop.f32.mrf.mxu0
    %179 = vdwg.mxu0
    %180 = vmatpush.bf16.msra.mxu0 %v150
    %181 = vmatpush.bf16.msra.mxu0 %v149
    %182 = vmatpush.bf16.msra.mxu0 %v148
    %183 = vmatpush.bf16.msra.mxu0 %v147
    %184 = vmatpush.bf16.msra.mxu0 %v146
    %185 = vmatpush.bf16.msra.mxu0 %v145
    %186 = vmatpush.bf16.msra.mxu0 %v144
    %187 = vmatpush.bf16.msra.mxu0 %v143
    %188 = vmatmul.bf16.gmra.mxu0 %v68
    %v189 = vpop.f32.mrf.mxu0
    %v190 = vadd.f32 %v177, %v189
    %v191 = vpop.f32.mrf.mxu0
    %192 = vdwg.mxu0
    %v193 = vpack.c.bf16 %v190, %v190
    %v194 = vld [vmem:[%s3] sm:$0xf]
    %v195 = vld [vmem:[%s3 + $0x4] sm:$0xf]
    %v196 = vld [vmem:[%s3 + $0x8] sm:$0xf]
    %v197 = vld [vmem:[%s3 + $0xc] sm:$0xf]
    %v198 = vld [vmem:[%s3 + $0x10] sm:$0xf]
    %v199 = vld [vmem:[%s3 + $0x14] sm:$0xf]
    %v200 = vld [vmem:[%s3 + $0x18] sm:$0xf]
    %v201 = vld [vmem:[%s3 + $0x1c] sm:$0xf]
    %v202 = vld [vmem:[%s3 + $0x20] sm:$0xf]
    %v203 = vld [vmem:[%s3 + $0x24] sm:$0xf]
    %v204 = vld [vmem:[%s3 + $0x28] sm:$0xf]
    %v205 = vld [vmem:[%s3 + $0x2c] sm:$0xf]
    %v206 = vld [vmem:[%s3 + $0x30] sm:$0xf]
    %v207 = vld [vmem:[%s3 + $0x34] sm:$0xf]
    %v208 = vld [vmem:[%s3 + $0x38] sm:$0xf]
    %v209 = vld [vmem:[%s3 + $0x3c] sm:$0xf]
    %v210 = vld [vmem:[%s4] sm:$0x1]
    %v212 = vperm.slane %v210, 0
    %v230 = vunpack.c.l.b16 %v194
    %v231 = vunpack.c.l.b16 %v195
    %v232 = vunpack.c.l.b16 %v196
    %v233 = vunpack.c.l.b16 %v197
    %v234 = vunpack.c.l.b16 %v198
    %v235 = vunpack.c.l.b16 %v199
    %v236 = vunpack.c.l.b16 %v200
    %v237 = vunpack.c.l.b16 %v201
    %v238 = vunpack.c.l.b16 %v202
    %v239 = vunpack.c.l.b16 %v203
    %v240 = vunpack.c.l.b16 %v204
    %v241 = vunpack.c.l.b16 %v205
    %v242 = vunpack.c.l.b16 %v206
    %v243 = vunpack.c.l.b16 %v207
    %v244 = vunpack.c.l.b16 %v208
    %v245 = vunpack.c.l.b16 %v209
    %v246 = vpack.c.b16 %v231, %v230
    %v247 = vpack.c.b16 %v233, %v232
    %v248 = vpack.c.b16 %v235, %v234
    %v249 = vpack.c.b16 %v237, %v236
    %v250 = vpack.c.b16 %v239, %v238
    %v251 = vpack.c.b16 %v241, %v240
    %v252 = vpack.c.b16 %v243, %v242
    %v253 = vpack.c.b16 %v245, %v244
    %262 = vmatpush.bf16.msra.mxu0 %v253
    %263 = vmatpush.bf16.msra.mxu0 %v252
    %264 = vmatpush.bf16.msra.mxu0 %v251
    %265 = vmatpush.bf16.msra.mxu0 %v250
    %266 = vmatpush.bf16.msra.mxu0 %v249
    %267 = vmatpush.bf16.msra.mxu0 %v248
    %268 = vmatpush.bf16.msra.mxu0 %v247
    %269 = vmatpush.bf16.msra.mxu0 %v246
    %270 = vmatmul.bf16.gmra.mxu0 %v193
    %v271 = vpop.f32.mrf.mxu0
    %v272 = vadd.f32 %v212, %v271
    %v273 = vpop.f32.mrf.mxu0
    %274 = vdwg.mxu0
    %v275 = vpack.c.bf16 %v272, %v272
    %v276 = vld [vmem:[%s5] sm:$0xf]
    %v277 = vld [vmem:[%s5 + $0x4] sm:$0xf]
    %v278 = vld [vmem:[%s6] sm:$0x1]
    %v280 = vperm.slane %v278, 0
    %v284 = vunpack.c.l.b16 %v276
    %v285 = vunpack.c.l.b16 %v277
    %v286 = vpack.c.b16 %v285, %v284
    %vm288 = vcmask 130048
    %v290 = vsel %vm288, %v275, 0
    %292 = vmatpush.bf16.msra.mxu0 0
    %293 = vmatpush.bf16.msra.mxu0 0
    %294 = vmatpush.bf16.msra.mxu0 0
    %295 = vmatpush.bf16.msra.mxu0 0
    %296 = vmatpush.bf16.msra.mxu0 0
    %297 = vmatpush.bf16.msra.mxu0 0
    %298 = vmatpush.bf16.msra.mxu0 0
    %299 = vmatpush.bf16.msra.mxu0 %v286
    %300 = vmatmul.bf16.gmra.mxu0 %v290
    %v301 = vpop.f32.mrf.mxu0
    %v302 = vadd.f32 %v280, %v301
    %v303 = vpop.f32.mrf.mxu0
    %304 = vdwg.mxu0
    %vm305 = vcmask 58368
    %306 = vst.msk [vmem:[#allocation2] sm:$0x3] %vm305, %v302
    // Predicated region
    $region30: #{cnn_forward.7} parent=1 // pred_check
      _
    $region31: #{cnn_forward.7} parent=1 // pred_check_branch
      %308 = sbr.rel (0) target = $region33
    $region32: #{cnn_forward.7} parent=1 // pred_region
      %310 = vsyncadd [#allocation3], 0
      %s312 = sshll.u32 [#allocation2], 4
      %s313 = int_to_ptr.vmem [resolvable:$true] %s312
      %s314 = sshll.u32 %s7, 4
      %s315 = int_to_ptr.hbm [resolvable:$true] %s314
      %317 = dma.vmem_to_hbm [thread:$0]  %s313, 32, %s315, [#allocation3]
    $region33: #{cnn_forward.7} parent=1 // pred_fallthru
      _
    // Predicated region
    $region34: #{cnn_forward.7} parent=1 // pred_check
      _
    $region35: #{cnn_forward.7} parent=1 // pred_check_branch
      %319 = sbr.rel (0) target = $region37
    $region36: #{cnn_forward.7} parent=1 // pred_region
      %321 = dma.done [#allocation3], 32
    $region37: #{cnn_forward.7} parent=1 // pred_fallthru
      _
    %322 = vsyncpa [#allocation3], 1

</llo_original>
